<compile_context>
chip_gen: v6e
topology: v6e:2x2x1
jax: 0.10.0
libtpu: 0.0.40
codegen_flags: <defaults>
</compile_context>

<pallas_src>
import functools

import jax
import jax.numpy as jnp
from jax.experimental import pallas as pl
from jax.experimental.pallas import tpu as pltpu

_BN_EPS = 1e-5


def _vmem_limit_bytes():
    """Per-generation VMEM budget (v7x: 64 MiB physical vs 128 MiB v5e/v6e)."""
    try:
        cap = int(getattr(pltpu.get_tpu_info(), "vmem_capacity_bytes", 0) or 0)
    except Exception:  # conservative fallback if the query is unavailable
        cap = 0
    if cap <= 0:
        return 32 * 1024 * 1024
    return int(min(max(cap * 3 // 4, 32 * 1024 * 1024), 100 * 1024 * 1024))


# ------------------------------ Pallas kernels --------------------------------

def _conv_kernel(*refs, kh, sh, ho, wo, kwcin, emit_stats):
    """One M-tile (one batch element) of the 3x3 conv, kw folded into K.

    refs layout (per grid step):
      refs[0:sh]     row-phase slabs, bf16, block (1, he, wo, kw*cin)
      refs[sh]       weights, bf16, (kh, kw*cin, cout)
      emit_stats=True  (BatchNorm path):
        refs[sh+1]   conv output, bf16, block (m_tile, cout)
        refs[sh+2]   stats output, f32, block (1, 2, cout): rows [sum, M2]
      emit_stats=False (bias path):
        refs[sh+1]   conv bias, f32, (1, cout)
        refs[sh+2]   output (bias + ReLU applied), bf16, block (m_tile, cout)
    """
    slab_refs = refs[:sh]
    w_ref = refs[sh]
    m = ho * wo

    acc = None
    for di in range(kh):            # statically unrolled: kh MXU dots, K=kw*cin
        off = di // sh
        patch = slab_refs[di % sh][:, off:off + ho, :, :].reshape(m, kwcin)
        d = jnp.dot(patch, w_ref[di], preferred_element_type=jnp.float32)
        acc = d if acc is None else acc + d

    if emit_stats:
        y_ref, st_ref = refs[sh + 1], refs[sh + 2]
        y_ref[...] = acc.astype(y_ref.dtype)
        # Per-tile stats: sum and centered M2 (two-pass within the tile, so the
        # global combine never does E[x^2] - E[x]^2 on large means).
        s1 = jnp.sum(acc, axis=0, keepdims=True)               # (1, cout)
        mean_t = s1 * (1.0 / m)
        d0 = acc - mean_t
        m2 = jnp.sum(d0 * d0, axis=0, keepdims=True)           # (1, cout)
        st_ref[...] = jnp.concatenate([s1, m2], axis=0)[None, :, :]
    else:
        b_ref, o_ref = refs[sh + 1], refs[sh + 2]
        y = acc + b_ref[...]
        o_ref[...] = jnp.maximum(y, 0.0).astype(o_ref.dtype)


def _bn_relu_kernel(y_ref, scale_ref, shift_ref, o_ref):
    """y * scale + shift, ReLU (per-channel scale/shift precomputed)."""
    y = y_ref[...].astype(jnp.float32)
    o = jnp.maximum(y * scale_ref[...] + shift_ref[...], 0.0)
    o_ref[...] = o.astype(o_ref.dtype)


# ---------------------------------- glue --------------------------------------

def conv3x3_bn_relu(x_nchw, params, *, stride, padding, batch_norm):
    """SimpleBlock.forward: NCHW float in, NCHW bf16 out."""
    n, cin, h, w = x_nchw.shape
    kh, kw, _, cout = params["w"].shape
    sh, sw = stride
    h_pad, w_pad = h + 2 * padding, w + 2 * padding
    ho = (h_pad - kh) // sh + 1
    wo = (w_pad - kw) // sw + 1
    kwcin = kw * cin
    m_tile = ho * wo
    m = n * m_tile

    # One output row-block per batch element.
    # TODO(synk): for large ho*wo also tile along ho (overlapping halo via
    # pl.Element index maps), sizing the tile against the per-gen VMEM budget.
    assert n == 1 or m_tile % 8 == 0, "per-sample tile rows must be 8-aligned"

    # NCHW -> NHWC bf16 + zero pad (bf16 halves activation DMA bytes).
    x = jnp.transpose(x_nchw, (0, 2, 3, 1)).astype(jnp.bfloat16)
    x = jnp.pad(x, ((0, 0), (padding, padding), (padding, padding), (0, 0)))

    # Row-phase slabs with the kw column taps concatenated along channels:
    #   slab[pi][b, r, j, dj*cin + c] = x_pad[b, pi + r*sh, j*sw + dj, c]
    # Conv tap row di is then a static slice (rows di//sh .. di//sh+ho) of
    # slab[di % sh]; the (dj, c) axes form the matmul K dimension.
    he = (kh - 1) // sh + ho
    for di in range(kh):
        rows_pi = (h_pad - (di % sh) + sh - 1) // sh
        # Guard: no tap window may read zero-padded extra slab rows.
        assert di // sh + ho <= rows_pi, (di, rows_pi, ho)
    row_slabs = []
    for pi in range(sh):
        cols = [x[:, pi::sh, dj:dj + sw * (wo - 1) + 1:sw, :] for dj in range(kw)]
        slab = jnp.concatenate(cols, axis=-1)            # (n, rows_pi, wo, kw*cin)
        cur_h = slab.shape[1]
        if cur_h < he:
            slab = jnp.pad(slab, ((0, 0), (0, he - cur_h), (0, 0), (0, 0)))
        elif cur_h > he:
            slab = slab[:, :he]
        row_slabs.append(slab)

    w_rows = params["w"].reshape(kh, kwcin, cout).astype(jnp.bfloat16)

    slab_spec = pl.BlockSpec((1, he, wo, kwcin), lambda i: (i, 0, 0, 0))
    w_spec = pl.BlockSpec((kh, kwcin, cout), lambda i: (0, 0, 0))
    row_spec = pl.BlockSpec((m_tile, cout), lambda i: (i, 0))
    vec_spec = pl.BlockSpec((1, cout), lambda i: (0, 0))

    cparams = pltpu.CompilerParams(dimension_semantics=("parallel",),
                                   vmem_limit_bytes=_vmem_limit_bytes())

    conv_kernel = functools.partial(_conv_kernel, kh=kh, sh=sh, ho=ho, wo=wo,
                                    kwcin=kwcin, emit_stats=batch_norm)

    if batch_norm:
        # Phase 1: per-tile conv output (bf16) + per-tile (sum, M2) partials.
        conv_y, stats = pl.pallas_call(
            conv_kernel,
            grid=(n,),
            out_shape=(jax.ShapeDtypeStruct((m, cout), jnp.bfloat16),
                       jax.ShapeDtypeStruct((n, 2, cout), jnp.float32)),
            in_specs=[slab_spec] * sh + [w_spec],
            out_specs=(row_spec, pl.BlockSpec((1, 2, cout), lambda i: (i, 0, 0))),
            compiler_params=cparams,
        )(*row_slabs, w_rows)

        # Tiny cross-tile combine (Chan's parallel variance).  Conv bias is
        # omitted: the batch-mean subtraction cancels it exactly (training-mode
        # BN with batch statistics — running-stat eval would need the bias).
        mean_t = stats[:, 0, :] / m_tile                     # (n, cout)
        m2_t = stats[:, 1, :]
        mean = jnp.mean(mean_t, axis=0, keepdims=True)       # (1, cout)
        m2 = jnp.sum(m2_t, axis=0, keepdims=True) + m_tile * jnp.sum(
            jnp.square(mean_t - mean), axis=0, keepdims=True)
        var = m2 / m                                         # biased, as torch BN
        scale = params["gamma"][None, :] * jax.lax.rsqrt(var + _BN_EPS)
        shift = params["beta"][None, :] - mean * scale

        # Phase 2: elementwise scale*y + shift, ReLU (tiled, parallel).
        out = pl.pallas_call(
            _bn_relu_kernel,
            grid=(n,),
            out_shape=jax.ShapeDtypeStruct((m, cout), jnp.bfloat16),
            in_specs=[row_spec, vec_spec, vec_spec],
            out_specs=row_spec,
            compiler_params=cparams,
        )(conv_y, scale.astype(jnp.float32), shift.astype(jnp.float32))
    else:
        out = pl.pallas_call(
            conv_kernel,
            grid=(n,),
            out_shape=jax.ShapeDtypeStruct((m, cout), jnp.bfloat16),
            in_specs=[slab_spec] * sh + [w_spec, vec_spec],
            out_specs=row_spec,
            compiler_params=cparams,
        )(*row_slabs, w_rows, params["b"][None, :].astype(jnp.float32))

    out = out.reshape(n, ho, wo, cout)
    return jnp.transpose(out, (0, 3, 1, 2))                  # NCHW, bf16


# ------------------------------- module port -----------------------------------

class SimpleBlock:
    """Pallas port of SimpleBlock: conv3x3 -> BatchNorm2d (train mode) -> ReLU."""

    def __init__(self, key, in_planes, out_planes, BatchNorm=True,
                 stride=(1, 2), padding=1):
        k_w, k_b = jax.random.split(key)
        self.stride = tuple(stride)
        self.padding = padding
        self.batch_norm = BatchNorm
        self.params = {
            # conv3x3: kernel_size=(3,3), bias=True  (stored HWIO here)
            "w": jax.random.normal(k_w, (3, 3, in_planes, out_planes),
                                   jnp.float32) * 0.05,
            "b": jax.random.normal(k_b, (out_planes,), jnp.float32) * 0.05,
            # nn.BatchNorm2d init: weight=1, bias=0
            "gamma": jnp.ones((out_planes,), jnp.float32),
            "beta": jnp.zeros((out_planes,), jnp.float32),
        }

    def __call__(self, x_nchw):
        return conv3x3_bn_relu(x_nchw, self.params, stride=self.stride,
                               padding=self.padding,
                               batch_norm=self.batch_norm)


# ---------------------------- pure-JAX reference -------------------------------

def _reference_forward(x_nchw, params, *, stride, padding, batch_norm):
    x = jnp.transpose(x_nchw, (0, 2, 3, 1)).astype(jnp.bfloat16)
    w = params["w"].astype(jnp.bfloat16)
    y = jax.lax.conv_general_dilated(
        x, w, window_strides=stride,
        padding=[(padding, padding), (padding, padding)],
        dimension_numbers=("NHWC", "HWIO", "NHWC"),
        preferred_element_type=jnp.float32)
    if batch_norm:
        # bias omitted: cancelled exactly by the batch-mean subtraction
        mean = jnp.mean(y, axis=(0, 1, 2), keepdims=True)
        var = jnp.mean(jnp.square(y - mean), axis=(0, 1, 2), keepdims=True)
        y = (y - mean) * jax.lax.rsqrt(var + _BN_EPS)
        y = y * params["gamma"] + params["beta"]
    else:
        y = y + params["b"]
    y = jnp.maximum(y, 0.0)
    return jnp.transpose(y, (0, 3, 1, 2))


# ----------------------------------- main ---------------------------------------

if __name__ == "__main__":
    key = jax.random.PRNGKey(0)
    k_param, k_x = jax.random.split(key)

    # Small shapes: batch=2, in_planes=64, H=8, W=32; out_planes=128 keeps the
    # kernel output lane-dense.  Default SimpleBlock config: stride=(1,2), pad=1.
    B, Cin, H, W = 2, 64, 8, 32
    Cout = 128
    x = jax.random.normal(k_x, (B, Cin, H, W), jnp.float32)

    # BatchNorm=True path (two-phase tiled kernel).
    block = SimpleBlock(k_param, Cin, Cout, BatchNorm=True,
                        stride=(1, 2), padding=1)
    out = jax.jit(lambda inp: block(inp))(x)
    jax.block_until_ready(out)
    assert out.shape == (B, Cout, 8, 16), out.shape
    ref = _reference_forward(x, block.params, stride=block.stride,
                             padding=block.padding, batch_norm=True)
    err = float(jnp.max(jnp.abs(out.astype(jnp.float32) - ref)))
    assert err < 7.5e-2, f"BN path max abs error vs reference: {err}"

    # BatchNorm=False path (conv bias + ReLU, single tiled kernel).
    block_nb = SimpleBlock(k_param, Cin, Cout, BatchNorm=False,
                           stride=(1, 2), padding=1)
    out_nb = jax.jit(lambda inp: block_nb(inp))(x)
    jax.block_until_ready(out_nb)
    ref_nb = _reference_forward(x, block_nb.params, stride=block_nb.stride,
                                padding=block_nb.padding, batch_norm=False)
    err_nb = float(jnp.max(jnp.abs(out_nb.astype(jnp.float32) - ref_nb)))
    assert err_nb < 7.5e-2, f"bias path max abs error vs reference: {err_nb}"

    print("KERNEL_OK")
</pallas_src>

<mosaic_0001>
module attributes {stable_mosaic.version = 11 : i64} {
  func.func @_conv_kernel(%arg0: i32, %arg1: memref<1x10x16x192xbf16, #tpu.memory_space<vmem>>, %arg2: memref<3x192x128xbf16, #tpu.memory_space<vmem>>, %arg3: memref<128x128xbf16, #tpu.memory_space<vmem>>, %arg4: memref<1x2x128xf32, #tpu.memory_space<vmem>>) attributes {dimension_semantics = [#tpu.dimension_semantics<parallel>], iteration_bounds = array<i64: 2>, scalar_prefetch = 0 : i64, scratch_operands = 0 : i64, tpu.core_type = #tpu.core_type<tc>, window_params = [{transform_indices = @transform_0, window_bounds = array<i64: 1, 10, 16, 192>}, {pipeline_mode = #tpu.pipeline_mode<synchronous>, transform_indices = @transform_1, window_bounds = array<i64: 3, 192, 128>}, {transform_indices = @transform_2, window_bounds = array<i64: 128, 128>}, {transform_indices = @transform_3, window_bounds = array<i64: 1, 2, 128>}]} {
    %c0 = arith.constant 0 : index
    %c0_0 = arith.constant 0 : index
    %c0_1 = arith.constant 0 : index
    %c0_2 = arith.constant 0 : index
    %0 = vector.load %arg1[%c0, %c0_0, %c0_1, %c0_2] : memref<1x10x16x192xbf16, #tpu.memory_space<vmem>>, vector<1x8x16x192xbf16>
    %1 = vector.shape_cast %0 : vector<1x8x16x192xbf16> to vector<128x192xbf16>
    %c0_3 = arith.constant 0 : index
    %c0_4 = arith.constant 0 : index
    %c0_5 = arith.constant 0 : index
    %2 = vector.load %arg2[%c0_3, %c0_4, %c0_5] : memref<3x192x128xbf16, #tpu.memory_space<vmem>>, vector<1x192x128xbf16>
    %3 = vector.shape_cast %2 : vector<1x192x128xbf16> to vector<192x128xbf16>
    %cst = arith.constant dense<0.000000e+00> : vector<128x128xf32>
    %4 = tpu.matmul %1, %3, %cst {dimension_numbers = #tpu.dot_dimension_numbers<[1], [0], [0], [1], [0, 0, 1, 1], [], []>} : vector<128x192xbf16>, vector<192x128xbf16>, vector<128x128xf32> -> vector<128x128xf32>
    %c0_6 = arith.constant 0 : index
    %c1 = arith.constant 1 : index
    %c0_7 = arith.constant 0 : index
    %c0_8 = arith.constant 0 : index
    %5 = vector.load %arg1[%c0_6, %c1, %c0_7, %c0_8] : memref<1x10x16x192xbf16, #tpu.memory_space<vmem>>, vector<1x8x16x192xbf16>
    %6 = vector.shape_cast %5 : vector<1x8x16x192xbf16> to vector<128x192xbf16>
    %c1_9 = arith.constant 1 : index
    %c0_10 = arith.constant 0 : index
    %c0_11 = arith.constant 0 : index
    %7 = vector.load %arg2[%c1_9, %c0_10, %c0_11] : memref<3x192x128xbf16, #tpu.memory_space<vmem>>, vector<1x192x128xbf16>
    %8 = vector.shape_cast %7 : vector<1x192x128xbf16> to vector<192x128xbf16>
    %cst_12 = arith.constant dense<0.000000e+00> : vector<128x128xf32>
    %9 = tpu.matmul %6, %8, %cst_12 {dimension_numbers = #tpu.dot_dimension_numbers<[1], [0], [0], [1], [0, 0, 1, 1], [], []>} : vector<128x192xbf16>, vector<192x128xbf16>, vector<128x128xf32> -> vector<128x128xf32>
    %10 = arith.addf %4, %9 : vector<128x128xf32>
    %c0_13 = arith.constant 0 : index
    %c2 = arith.constant 2 : index
    %c0_14 = arith.constant 0 : index
    %c0_15 = arith.constant 0 : index
    %11 = vector.load %arg1[%c0_13, %c2, %c0_14, %c0_15] : memref<1x10x16x192xbf16, #tpu.memory_space<vmem>>, vector<1x8x16x192xbf16>
    %12 = vector.shape_cast %11 : vector<1x8x16x192xbf16> to vector<128x192xbf16>
    %c2_16 = arith.constant 2 : index
    %c0_17 = arith.constant 0 : index
    %c0_18 = arith.constant 0 : index
    %13 = vector.load %arg2[%c2_16, %c0_17, %c0_18] : memref<3x192x128xbf16, #tpu.memory_space<vmem>>, vector<1x192x128xbf16>
    %14 = vector.shape_cast %13 : vector<1x192x128xbf16> to vector<192x128xbf16>
    %cst_19 = arith.constant dense<0.000000e+00> : vector<128x128xf32>
    %15 = tpu.matmul %12, %14, %cst_19 {dimension_numbers = #tpu.dot_dimension_numbers<[1], [0], [0], [1], [0, 0, 1, 1], [], []>} : vector<128x192xbf16>, vector<192x128xbf16>, vector<128x128xf32> -> vector<128x128xf32>
    %16 = arith.addf %10, %15 : vector<128x128xf32>
    %17 = arith.truncf %16 : vector<128x128xf32> to vector<128x128xbf16>
    %c0_20 = arith.constant 0 : index
    %c0_21 = arith.constant 0 : index
    %18 = vector.load %arg3[%c0_20, %c0_21] : memref<128x128xbf16, #tpu.memory_space<vmem>>, vector<128x128xbf16>
    tpu.vector_store %arg3[%c0_20, %c0_21], %17 {strides = array<i32>} : memref<128x128xbf16, #tpu.memory_space<vmem>>, vector<128x128xbf16>,
    %cst_22 = arith.constant dense<0.000000e+00> : vector<128xf32>
    %19 = vector.multi_reduction <add>, %16, %cst_22 [0] : vector<128x128xf32> to vector<128xf32>
    %20 = vector.shape_cast %19 : vector<128xf32> to vector<1x128xf32>
    %cst_23 = arith.constant 7.812500e-03 : f32
    %21 = vector.broadcast %cst_23 : f32 to vector<1x128xf32>
    %22 = arith.mulf %20, %21 : vector<1x128xf32>
    %23 = vector.broadcast %22 : vector<1x128xf32> to vector<128x128xf32>
    %24 = arith.subf %16, %23 : vector<128x128xf32>
    %25 = arith.mulf %24, %24 : vector<128x128xf32>
    %cst_24 = arith.constant dense<0.000000e+00> : vector<128xf32>
    %26 = vector.multi_reduction <add>, %25, %cst_24 [0] : vector<128x128xf32> to vector<128xf32>
    %27 = vector.shape_cast %26 : vector<128xf32> to vector<1x128xf32>
    %28 = tpu.concatenate %20, %27 in 0 : vector<1x128xf32>, vector<1x128xf32> -> vector<2x128xf32>
    %29 = vector.shape_cast %28 : vector<2x128xf32> to vector<1x2x128xf32>
    %c0_25 = arith.constant 0 : index
    %c0_26 = arith.constant 0 : index
    %c0_27 = arith.constant 0 : index
    %30 = vector.load %arg4[%c0_25, %c0_26, %c0_27] : memref<1x2x128xf32, #tpu.memory_space<vmem>>, vector<1x2x128xf32>
    tpu.vector_store %arg4[%c0_25, %c0_26, %c0_27], %29 {strides = array<i32>} : memref<1x2x128xf32, #tpu.memory_space<vmem>>, vector<1x2x128xf32>,
    return
  }
  func.func @transform_0(%arg0: i32) -> (i32, i32, i32, i32) {
    %c0_i32 = arith.constant 0 : i32
    %c0_i32_0 = arith.constant 0 : i32
    %c0_i32_1 = arith.constant 0 : i32
    %c0_i32_2 = arith.constant 0 : i32
    return %arg0, %c0_i32, %c0_i32_0, %c0_i32_1 : i32, i32, i32, i32
  }
  func.func @transform_1(%arg0: i32) -> (i32, i32, i32) {
    %c0_i32 = arith.constant 0 : i32
    %c0_i32_0 = arith.constant 0 : i32
    %c0_i32_1 = arith.constant 0 : i32
    %c0_i32_2 = arith.constant 0 : i32
    return %c0_i32, %c0_i32_0, %c0_i32_1 : i32, i32, i32
  }
  func.func @transform_2(%arg0: i32) -> (i32, i32) {
    %c0_i32 = arith.constant 0 : i32
    %c0_i32_0 = arith.constant 0 : i32
    return %arg0, %c0_i32 : i32, i32
  }
  func.func @transform_3(%arg0: i32) -> (i32, i32, i32) {
    %c0_i32 = arith.constant 0 : i32
    %c0_i32_0 = arith.constant 0 : i32
    %c0_i32_1 = arith.constant 0 : i32
    return %arg0, %c0_i32, %c0_i32_0 : i32, i32, i32
  }
}

module attributes {stable_mosaic.version = 11 : i64} {
  func.func @_bn_relu_kernel(%arg0: i32, %arg1: memref<128x128xbf16, #tpu.memory_space<vmem>>, %arg2: memref<1x128xf32, #tpu.memory_space<vmem>>, %arg3: memref<1x128xf32, #tpu.memory_space<vmem>>, %arg4: memref<128x128xbf16, #tpu.memory_space<vmem>>) attributes {dimension_semantics = [#tpu.dimension_semantics<parallel>], iteration_bounds = array<i64: 2>, scalar_prefetch = 0 : i64, scratch_operands = 0 : i64, tpu.core_type = #tpu.core_type<tc>, window_params = [{transform_indices = @transform_0, window_bounds = array<i64: 128, 128>}, {pipeline_mode = #tpu.pipeline_mode<synchronous>, transform_indices = @transform_1, window_bounds = array<i64: 1, 128>}, {pipeline_mode = #tpu.pipeline_mode<synchronous>, transform_indices = @transform_2, window_bounds = array<i64: 1, 128>}, {transform_indices = @transform_3, window_bounds = array<i64: 128, 128>}]} {
    %c0 = arith.constant 0 : index
    %c0_0 = arith.constant 0 : index
    %0 = vector.load %arg1[%c0, %c0_0] : memref<128x128xbf16, #tpu.memory_space<vmem>>, vector<128x128xbf16>
    %1 = arith.extf %0 : vector<128x128xbf16> to vector<128x128xf32>
    %c0_1 = arith.constant 0 : index
    %c0_2 = arith.constant 0 : index
    %2 = vector.load %arg2[%c0_1, %c0_2] : memref<1x128xf32, #tpu.memory_space<vmem>>, vector<1x128xf32>
    %3 = vector.broadcast %2 : vector<1x128xf32> to vector<128x128xf32>
    %4 = arith.mulf %1, %3 : vector<128x128xf32>
    %c0_3 = arith.constant 0 : index
    %c0_4 = arith.constant 0 : index
    %5 = vector.load %arg3[%c0_3, %c0_4] : memref<1x128xf32, #tpu.memory_space<vmem>>, vector<1x128xf32>
    %6 = vector.broadcast %5 : vector<1x128xf32> to vector<128x128xf32>
    %7 = arith.addf %4, %6 : vector<128x128xf32>
    %cst = arith.constant 0.000000e+00 : f32
    %8 = vector.broadcast %cst : f32 to vector<128x128xf32>
    %9 = arith.maximumf %7, %8 : vector<128x128xf32>
    %10 = arith.truncf %9 : vector<128x128xf32> to vector<128x128xbf16>
    %c0_5 = arith.constant 0 : index
    %c0_6 = arith.constant 0 : index
    %11 = vector.load %arg4[%c0_5, %c0_6] : memref<128x128xbf16, #tpu.memory_space<vmem>>, vector<128x128xbf16>
    tpu.vector_store %arg4[%c0_5, %c0_6], %10 {strides = array<i32>} : memref<128x128xbf16, #tpu.memory_space<vmem>>, vector<128x128xbf16>,
    return
  }
  func.func @transform_0(%arg0: i32) -> (i32, i32) {
    %c0_i32 = arith.constant 0 : i32
    %c0_i32_0 = arith.constant 0 : i32
    return %arg0, %c0_i32 : i32, i32
  }
  func.func @transform_1(%arg0: i32) -> (i32, i32) {
    %c0_i32 = arith.constant 0 : i32
    %c0_i32_0 = arith.constant 0 : i32
    %c0_i32_1 = arith.constant 0 : i32
    return %c0_i32, %c0_i32_0 : i32, i32
  }
  func.func @transform_2(%arg0: i32) -> (i32, i32) {
    %c0_i32 = arith.constant 0 : i32
    %c0_i32_0 = arith.constant 0 : i32
    %c0_i32_1 = arith.constant 0 : i32
    return %c0_i32, %c0_i32_0 : i32, i32
  }
  func.func @transform_3(%arg0: i32) -> (i32, i32) {
    %c0_i32 = arith.constant 0 : i32
    %c0_i32_0 = arith.constant 0 : i32
    return %arg0, %c0_i32 : i32, i32
  }
}

</mosaic_0001>

<llo_original>
// kernel: _lambda_.3
$region0: #{_lambda_.3}
  #allocation0 [shape = 'u32[]', space=smem, size = 0x4, offset = 0x4, fixed_abs, tag = 'smem constant byte address 0x4 - core index']
  #allocation1 [shape = 'u32[144,128]{1,0:T(1,128)}', space=vmem, size = 0x12000, scoped, tag = 'internal scratch']
  %s0 = inlined_call_operand.vmem [shape: bf16[256,128], index: 0, kind: input, shape index: {}]
  %s1 = inlined_call_operand.vmem [shape: f32[1,128], index: 1, kind: input, shape index: {}]
  %s2 = inlined_call_operand.vmem [shape: f32[1,128], index: 2, kind: input, shape index: {}]
  %s3 = inlined_call_operand.hbm [shape: bf16[256,128], index: 3, kind: output, shape index: {}]
  %s4 = sld [smem:[#allocation0]]
  $region45: #{_lambda_.3} parent=0
    _
  %s6 = ssub.s32 1, %s4
  %s7 = scalar_select 0, %s6, %s4
  $region1: #{_lambda_.3} parent=0
    #allocation2 [shape = 'u8[65536]{0}', space=vmem, size = 0x10000, scoped, tag = 'output window, operand 0']
    #allocation3 [shape = 's32[2]{0}', space=sflag, size = 0x8, scoped, tag = 'scoped memory for _lambda_.3']
    %8 = vsyncpa [#allocation3], 0
    %s9 = scalar_lea.sflag [#allocation3], 1
    %10 = vsyncpa %s9, 0
    loop: start=0, step=1, limit=4
    $region2: #{_lambda_.3} parent=1 // loop_pre_header
      _
    $region3: #{_lambda_.3} parent=1 // loop_header
      %s12 = sphi 0, %s16
      %p13 = scmp.ge.s32.totalorder %s12, 4
      %s22 = sphi 0, %s24
      %s25 = sphi 0, %s22
      %s26 = sphi 0, %s25
      %s42 = sphi 0, %s26
      %s46 = sphi 0, %s46
      %s48 = sphi 0, %s46
      %s49 = sphi 0, %s48
      %s63 = sphi 0, %s49
      %s67 = sphi 0, %s67
      %s69 = sphi 0, %s67
      %s70 = sphi 0, %s69
      %s84 = sphi 0, %s70
      %s90 = sphi 0, %s92
      %s93 = sphi 0, %s90
      %s94 = sphi 0, %s93
      %s110 = sphi 0, %s94
    $region4: #{_lambda_.3} parent=1 // loop_header_branch
      %15 = sbr.rel (%p13) target = $region8
    $region5: #{_lambda_.3} parent=1 // loop_body
      %s17 = ssub.s32 %s12, 1
      %s18 = ssub.s32 %s12, 2
      %s19 = sadd.s32 %s12, 1
      %s20 = ssub.s32 %s12, %s19
      %p21 = scmp.eq.s32.totalorder %s20, 0
      %s23 = sadd.s32 %s22, 1
      %s24 = scalar_select %p21, %s22, %s23
      %p27 = pneg %p21
      %p28 = scmp.eq.s32.totalorder %s12, 1
      %p29 = por %p27, %p28
      %p30 = scmp.ne.s32.totalorder %s22, %s25
      %p31 = scmp.eq.s32.totalorder %s12, 0
      %p32 = por %p30, %p31
      %p33 = scmp.ne.s32.totalorder %s22, %s25
      %p34 = scmp.eq.s32.totalorder %s17, 1
      %p35 = por %p33, %p34
      %p36 = scmp.ne.s32.totalorder %s25, %s26
      %p37 = scmp.eq.s32.totalorder %s17, 0
      %p38 = por %p36, %p37
      %p39 = scmp.ne.s32.totalorder %s25, %s26
      %p40 = scmp.eq.s32.totalorder %s18, 1
      %p41 = por %p39, %p40
      %p43 = scmp.ne.s32.totalorder %s26, %s42
      %p44 = scmp.eq.s32.totalorder %s18, 0
      %p45 = por %p43, %p44
      %s47 = sadd.s32 %s46, 1
      %p50 = scmp.eq.s32.totalorder %s12, 1
      %p51 = scmp.ne.s32.totalorder %s46, %s48
      %p52 = scmp.eq.s32.totalorder %s12, 0
      %p53 = por %p51, %p52
      %p54 = scmp.ne.s32.totalorder %s46, %s48
      %p55 = scmp.eq.s32.totalorder %s17, 1
      %p56 = por %p54, %p55
      %p57 = scmp.ne.s32.totalorder %s48, %s49
      %p58 = scmp.eq.s32.totalorder %s17, 0
      %p59 = por %p57, %p58
      %p60 = scmp.ne.s32.totalorder %s48, %s49
      %p61 = scmp.eq.s32.totalorder %s18, 1
      %p62 = por %p60, %p61
      %p64 = scmp.ne.s32.totalorder %s49, %s63
      %p65 = scmp.eq.s32.totalorder %s18, 0
      %p66 = por %p64, %p65
      %s68 = sadd.s32 %s67, 1
      %p71 = scmp.eq.s32.totalorder %s12, 1
      %p72 = scmp.ne.s32.totalorder %s67, %s69
      %p73 = scmp.eq.s32.totalorder %s12, 0
      %p74 = por %p72, %p73
      %p75 = scmp.ne.s32.totalorder %s67, %s69
      %p76 = scmp.eq.s32.totalorder %s17, 1
      %p77 = por %p75, %p76
      %p78 = scmp.ne.s32.totalorder %s69, %s70
      %p79 = scmp.eq.s32.totalorder %s17, 0
      %p80 = por %p78, %p79
      %p81 = scmp.ne.s32.totalorder %s69, %s70
      %p82 = scmp.eq.s32.totalorder %s18, 1
      %p83 = por %p81, %p82
      %p85 = scmp.ne.s32.totalorder %s70, %s84
      %p86 = scmp.eq.s32.totalorder %s18, 0
      %p87 = por %p85, %p86
      %s88 = ssub.s32 %s12, %s19
      %p89 = scmp.eq.s32.totalorder %s88, 0
      %s91 = sadd.s32 %s90, 1
      %s92 = scalar_select %p89, %s90, %s91
      %p95 = pneg %p89
      %p96 = scmp.eq.s32.totalorder %s12, 1
      %p97 = por %p95, %p96
      %p98 = scmp.ne.s32.totalorder %s90, %s93
      %p99 = scmp.eq.s32.totalorder %s12, 0
      %p100 = por %p98, %p99
      %p101 = scmp.ne.s32.totalorder %s90, %s93
      %p102 = scmp.eq.s32.totalorder %s17, 1
      %p103 = por %p101, %p102
      %p104 = scmp.ne.s32.totalorder %s93, %s94
      %p105 = scmp.eq.s32.totalorder %s17, 0
      %p106 = por %p104, %p105
      %p107 = scmp.ne.s32.totalorder %s93, %s94
      %p108 = scmp.eq.s32.totalorder %s18, 1
      %p109 = por %p107, %p108
      %p111 = scmp.ne.s32.totalorder %s94, %s110
      %p112 = scmp.eq.s32.totalorder %s18, 0
      %p113 = por %p111, %p112
      %p114 = scmp.le.s32.totalorder 1, %s12
      %p115 = scmp.lt.s32.totalorder %s12, 3
      %p116 = pnand %p114, %p115
      %p117 = pneg %p116
      // Predicated region
      $region9: #{_lambda_.3} parent=5 // pred_check
        _
      $region10: #{_lambda_.3} parent=5 // pred_check_branch
        %119 = sbr.rel (%p116) target = $region12
      $region11: #{_lambda_.3} parent=5 // pred_region
        %s120 = ssub.s32 %s12, 1
        // Predicated region
        $region13: #{_lambda_.3} parent=11 // pred_check
          %p121 = pneg %p59
        $region14: #{_lambda_.3} parent=11 // pred_check_branch
          %123 = sbr.rel (%p121) target = $region16
        $region15: #{_lambda_.3} parent=11 // pred_region
          _
        $region16: #{_lambda_.3} parent=11 // pred_fallthru
          _
        // Predicated region
        $region17: #{_lambda_.3} parent=11 // pred_check
          %p124 = pneg %p80
        $region18: #{_lambda_.3} parent=11 // pred_check_branch
          %126 = sbr.rel (%p124) target = $region20
        $region19: #{_lambda_.3} parent=11 // pred_region
          _
        $region20: #{_lambda_.3} parent=11 // pred_fallthru
          _
      $region12: #{_lambda_.3} parent=5 // pred_fallthru
        _
      %p127 = scmp.lt.s32.totalorder %s12, 2
      // Predicated region
      $region21: #{_lambda_.3} parent=5 // pred_check
        %p128 = pneg %p127
      $region22: #{_lambda_.3} parent=5 // pred_check_branch
        %130 = sbr.rel (%p128) target = $region24
      $region23: #{_lambda_.3} parent=5 // pred_region
        // Predicated region
        $region25: #{_lambda_.3} parent=23 // pred_check
          %p131 = pneg %p32
        $region26: #{_lambda_.3} parent=23 // pred_check_branch
          %133 = sbr.rel (%p131) target = $region28
        $region27: #{_lambda_.3} parent=23 // pred_region
          %s134 = smul.u32 16, %s12
          %p135 = scmp.lt.s32.totalorder %s134, 31
          %s136 = scalar_select %p135, %s134, 31
          %s137 = smul.addr %s136, 4
          %s138 = scalar_lea.vmem %s0, %s137
          %s139 = smul.u32 16, %s12
        $region28: #{_lambda_.3} parent=23 // pred_fallthru
          _
      $region24: #{_lambda_.3} parent=5 // pred_fallthru
        _
      %p140 = scmp.le.s32.totalorder 1, %s12
      %p141 = scmp.lt.s32.totalorder %s12, 3
      %p142 = pnand %p140, %p141
      %p143 = pneg %p142
      // Predicated region
      $region29: #{_lambda_.3} parent=5 // pred_check
        _
      $region30: #{_lambda_.3} parent=5 // pred_check_branch
        %145 = sbr.rel (%p142) target = $region32
      $region31: #{_lambda_.3} parent=5 // pred_region
        %s146 = ssub.s32 %s12, 1
        %s147 = smul.u32 16, %s17
        %p148 = scmp.lt.s32.totalorder %s147, 31
        %s149 = scalar_select %p148, %s147, 31
        %s150 = smul.addr %s149, 4
        %s151 = scalar_lea.vmem %s0, %s150
        %p152 = pneg %p38
        %p153 = pneg %p35
        %p154 = pneg %p59
        %p155 = pneg %p56
        %p156 = pneg %p80
        %p157 = pneg %p77
        %p158 = pneg %p106
        %p159 = pneg %p103
        %s160 = sand.u32 %s93, 1
        %s161 = scalar_lea.sflag [#allocation3], %s160
        %s162 = sand.u32 %s93, 1
        %s163 = smul.addr %s162, 64
        %s164 = scalar_lea.vmem [#allocation2], %s163
        %s165 = smul.u32 16, %s17
        %p166 = scmp.lt.s32.totalorder %s165, 31
        %s167 = scalar_select %p166, %s165, 31
        %s168 = smul.addr %s167, 4
        %s169 = scalar_lea.vmem %s0, %s168
        %s170 = smul.u32 16, %s17
        %s171 = smul.u32 16, %s17
        %v172 = vld [vmem:[%s169] sm:$0xf]
        %v173 = vld [vmem:[%s169 + $0x4] sm:$0xf]
        %v174 = vld [vmem:[%s169 + $0x8] sm:$0xf]
        %v175 = vld [vmem:[%s169 + $0xc] sm:$0xf]
        %v176 = vld [vmem:[%s169 + $0x10] sm:$0xf]
        %v177 = vld [vmem:[%s169 + $0x14] sm:$0xf]
        %v178 = vld [vmem:[%s169 + $0x18] sm:$0xf]
        %v179 = vld [vmem:[%s169 + $0x1c] sm:$0xf]
        %v180 = vld [vmem:[%s169 + $0x20] sm:$0xf]
        %v181 = vld [vmem:[%s169 + $0x24] sm:$0xf]
        %v182 = vld [vmem:[%s169 + $0x28] sm:$0xf]
        %v183 = vld [vmem:[%s169 + $0x2c] sm:$0xf]
        %v184 = vld [vmem:[%s169 + $0x30] sm:$0xf]
        %v185 = vld [vmem:[%s169 + $0x34] sm:$0xf]
        %v186 = vld [vmem:[%s169 + $0x38] sm:$0xf]
        %v187 = vld [vmem:[%s169 + $0x3c] sm:$0xf]
        %v188 = vunpack.c.l.bf16 %v172
        %v189 = vunpack.c.l.bf16 %v173
        %v190 = vunpack.c.l.bf16 %v174
        %v191 = vunpack.c.l.bf16 %v175
        %v192 = vunpack.c.l.bf16 %v176
        %v193 = vunpack.c.l.bf16 %v177
        %v194 = vunpack.c.l.bf16 %v178
        %v195 = vunpack.c.l.bf16 %v179
        %v196 = vunpack.c.l.bf16 %v180
        %v197 = vunpack.c.l.bf16 %v181
        %v198 = vunpack.c.l.bf16 %v182
        %v199 = vunpack.c.l.bf16 %v183
        %v200 = vunpack.c.l.bf16 %v184
        %v201 = vunpack.c.l.bf16 %v185
        %v202 = vunpack.c.l.bf16 %v186
        %v203 = vunpack.c.l.bf16 %v187
        %v204 = vld [vmem:[%s1] sm:$0x1]
        %v206 = vlaneseq
        %v207 = vshrl.u32 %v206, 7
        %v208 = vsub.s32 0, %v207
        %v209 = vrot.slane %v204, %v208
        %v211 = vmul.f32 %v188, %v209
        %v212 = vmul.f32 %v189, %v209
        %v213 = vmul.f32 %v190, %v209
        %v214 = vmul.f32 %v191, %v209
        %v215 = vmul.f32 %v192, %v209
        %v216 = vmul.f32 %v193, %v209
        %v217 = vmul.f32 %v194, %v209
        %v218 = vmul.f32 %v195, %v209
        %v219 = vmul.f32 %v196, %v209
        %v220 = vmul.f32 %v197, %v209
        %v221 = vmul.f32 %v198, %v209
        %v222 = vmul.f32 %v199, %v209
        %v223 = vmul.f32 %v200, %v209
        %v224 = vmul.f32 %v201, %v209
        %v225 = vmul.f32 %v202, %v209
        %v226 = vmul.f32 %v203, %v209
        %v227 = vld [vmem:[%s2] sm:$0x1]
        %v229 = vlaneseq
        %v230 = vshrl.u32 %v229, 7
        %v231 = vsub.s32 0, %v230
        %v232 = vrot.slane %v227, %v231
        %v234 = vadd.f32 %v211, %v232
        %v235 = vadd.f32 %v212, %v232
        %v236 = vadd.f32 %v213, %v232
        %v237 = vadd.f32 %v214, %v232
        %v238 = vadd.f32 %v215, %v232
        %v239 = vadd.f32 %v216, %v232
        %v240 = vadd.f32 %v217, %v232
        %v241 = vadd.f32 %v218, %v232
        %v242 = vadd.f32 %v219, %v232
        %v243 = vadd.f32 %v220, %v232
        %v244 = vadd.f32 %v221, %v232
        %v245 = vadd.f32 %v222, %v232
        %v246 = vadd.f32 %v223, %v232
        %v247 = vadd.f32 %v224, %v232
        %v248 = vadd.f32 %v225, %v232
        %v249 = vadd.f32 %v226, %v232
        %v250 = vmax.f32 %v234, 0.0
        %v251 = vmax.f32 %v235, 0.0
        %v252 = vmax.f32 %v236, 0.0
        %v253 = vmax.f32 %v237, 0.0
        %v254 = vmax.f32 %v238, 0.0
        %v255 = vmax.f32 %v239, 0.0
        %v256 = vmax.f32 %v240, 0.0
        %v257 = vmax.f32 %v241, 0.0
        %v258 = vmax.f32 %v242, 0.0
        %v259 = vmax.f32 %v243, 0.0
        %v260 = vmax.f32 %v244, 0.0
        %v261 = vmax.f32 %v245, 0.0
        %v262 = vmax.f32 %v246, 0.0
        %v263 = vmax.f32 %v247, 0.0
        %v264 = vmax.f32 %v248, 0.0
        %v265 = vmax.f32 %v249, 0.0
        %v266 = vpack.c.bf16 %v251, %v250
        %v267 = vpack.c.bf16 %v253, %v252
        %v268 = vpack.c.bf16 %v255, %v254
        %v269 = vpack.c.bf16 %v257, %v256
        %v270 = vpack.c.bf16 %v259, %v258
        %v271 = vpack.c.bf16 %v261, %v260
        %v272 = vpack.c.bf16 %v263, %v262
        %v273 = vpack.c.bf16 %v265, %v264
        %v282 = vunpack.c.l.b16 %v266
        %v283 = vunpack.c.h.b16 %v266
        %v284 = vunpack.c.l.b16 %v267
        %v285 = vunpack.c.h.b16 %v267
        %v286 = vunpack.c.l.b16 %v268
        %v287 = vunpack.c.h.b16 %v268
        %v288 = vunpack.c.l.b16 %v269
        %v289 = vunpack.c.h.b16 %v269
        %v290 = vunpack.c.l.b16 %v270
        %v291 = vunpack.c.h.b16 %v270
        %v292 = vunpack.c.l.b16 %v271
        %v293 = vunpack.c.h.b16 %v271
        %v294 = vunpack.c.l.b16 %v272
        %v295 = vunpack.c.h.b16 %v272
        %v296 = vunpack.c.l.b16 %v273
        %v297 = vunpack.c.h.b16 %v273
        %v298 = vpack.c.b16 %v282, %v282
        %v299 = vpack.c.b16 %v283, %v283
        %v300 = vpack.c.b16 %v284, %v284
        %v301 = vpack.c.b16 %v285, %v285
        %v302 = vpack.c.b16 %v286, %v286
        %v303 = vpack.c.b16 %v287, %v287
        %v304 = vpack.c.b16 %v288, %v288
        %v305 = vpack.c.b16 %v289, %v289
        %v306 = vpack.c.b16 %v290, %v290
        %v307 = vpack.c.b16 %v291, %v291
        %v308 = vpack.c.b16 %v292, %v292
        %v309 = vpack.c.b16 %v293, %v293
        %v310 = vpack.c.b16 %v294, %v294
        %v311 = vpack.c.b16 %v295, %v295
        %v312 = vpack.c.b16 %v296, %v296
        %v313 = vpack.c.b16 %v297, %v297
        %330 = vst [vmem:[%s164] sm:$0xf] %v298
        %331 = vst [vmem:[%s164 + $0x4] sm:$0xf] %v299
        %332 = vst [vmem:[%s164 + $0x8] sm:$0xf] %v300
        %333 = vst [vmem:[%s164 + $0xc] sm:$0xf] %v301
        %334 = vst [vmem:[%s164 + $0x10] sm:$0xf] %v302
        %335 = vst [vmem:[%s164 + $0x14] sm:$0xf] %v303
        %336 = vst [vmem:[%s164 + $0x18] sm:$0xf] %v304
        %337 = vst [vmem:[%s164 + $0x1c] sm:$0xf] %v305
        %338 = vst [vmem:[%s164 + $0x20] sm:$0xf] %v306
        %339 = vst [vmem:[%s164 + $0x24] sm:$0xf] %v307
        %340 = vst [vmem:[%s164 + $0x28] sm:$0xf] %v308
        %341 = vst [vmem:[%s164 + $0x2c] sm:$0xf] %v309
        %342 = vst [vmem:[%s164 + $0x30] sm:$0xf] %v310
        %343 = vst [vmem:[%s164 + $0x34] sm:$0xf] %v311
        %344 = vst [vmem:[%s164 + $0x38] sm:$0xf] %v312
        %345 = vst [vmem:[%s164 + $0x3c] sm:$0xf] %v313
        %s346 = sand.u32 %s93, 1
        %s347 = scalar_lea.sflag [#allocation3], %s346
        %s348 = sand.u32 %s93, 1
        %s349 = smul.addr %s348, 64
        %s350 = scalar_lea.vmem [#allocation2], %s349
        // Predicated region
        $region33: #{_lambda_.3} parent=31 // pred_check
          %p351 = pneg %p103
        $region34: #{_lambda_.3} parent=31 // pred_check_branch
          %353 = sbr.rel (%p351) target = $region36
        $region35: #{_lambda_.3} parent=31 // pred_region
          %s354 = smul.u32 16, %s17
          %s356 = ssub.s32 1024, 1024
          %357 = vsyncadd %s347, %s356
          %s358 = smul.addr %s354, 64
          %s359 = scalar_lea.hbm %s3, %s358
          %s360 = sshll.u32 %s350, 4
          %s361 = int_to_ptr.vmem [resolvable:$true] %s360
          %366 = dma.vmem_to_hbm [thread:$0]  %s361, 1024, %s359, %s347, 64, 64, 4
        $region36: #{_lambda_.3} parent=31 // pred_fallthru
          _
      $region32: #{_lambda_.3} parent=5 // pred_fallthru
        _
      %p367 = scmp.le.s32.totalorder 2, %s12
      // Predicated region
      $region37: #{_lambda_.3} parent=5 // pred_check
        %p368 = pneg %p367
      $region38: #{_lambda_.3} parent=5 // pred_check_branch
        %370 = sbr.rel (%p368) target = $region40
      $region39: #{_lambda_.3} parent=5 // pred_region
        %s371 = ssub.s32 %s12, 2
        // Predicated region
        $region41: #{_lambda_.3} parent=39 // pred_check
          %p372 = pneg %p109
        $region42: #{_lambda_.3} parent=39 // pred_check_branch
          %374 = sbr.rel (%p372) target = $region44
        $region43: #{_lambda_.3} parent=39 // pred_region
          %s375 = sand.u32 %s94, 1
          %s376 = scalar_lea.sflag [#allocation3], %s375
          %s377 = sand.u32 %s94, 1
          %s378 = smul.addr %s377, 64
          %s379 = scalar_lea.vmem [#allocation2], %s378
          %380 = dma.done %s376, 1024
        $region44: #{_lambda_.3} parent=39 // pred_fallthru
          _
      $region40: #{_lambda_.3} parent=5 // pred_fallthru
        _
    $region6: #{_lambda_.3} parent=1 // loop_footer
      %s16 = sadd.s32 1, %s12
    $region7: #{_lambda_.3} parent=1 // loop_footer_branch
      %11 = sbr.rel target = $region3
    $region8: #{_lambda_.3} parent=1 // loop_exit
      _
    %381 = vsyncpa [#allocation3], 1
    %s382 = scalar_lea.sflag [#allocation3], 1
    %383 = vsyncpa %s382, 1

// kernel: _lambda_.2
$region0: #{_lambda_.2}
  #allocation0 [shape = 'u32[]', space=smem, size = 0x4, offset = 0x4, fixed_abs, tag = 'smem constant byte address 0x4 - core index']
  #allocation1 [shape = 'u32[144,128]{1,0:T(1,128)}', space=vmem, size = 0x12000, scoped, tag = 'internal scratch']
  %s0 = inlined_call_operand.vmem [shape: bf16[2,10,16,192], index: 0, kind: input, shape index: {}]
  %s1 = inlined_call_operand.vmem [shape: bf16[3,192,128], index: 1, kind: input, shape index: {}]
  %s2 = inlined_call_operand.vmem [shape: bf16[256,128], index: 2, kind: output, shape index: {0}]
  %s3 = inlined_call_operand.vmem [shape: f32[2,2,128], index: 3, kind: output, shape index: {1}]
  %4 = xla_tuple %s2, %s3
  %s5 = sld [smem:[#allocation0]]
  $region49: #{_lambda_.2} parent=0
    _
  %s7 = ssub.s32 1, %s5
  %s8 = scalar_select 0, %s7, %s5
  loop: start=0, step=1, limit=4
  $region2: #{_lambda_.2} parent=0 // loop_pre_header
    _
  $region3: #{_lambda_.2} parent=0 // loop_header
    %s10 = sphi 0, %s14
    %p11 = scmp.ge.s32.totalorder %s10, 4
    %s20 = sphi 0, %s22
    %s23 = sphi 0, %s20
    %s24 = sphi 0, %s23
    %s40 = sphi 0, %s24
    %s44 = sphi 0, %s44
    %s46 = sphi 0, %s44
    %s47 = sphi 0, %s46
    %s61 = sphi 0, %s47
    %s67 = sphi 0, %s69
    %s70 = sphi 0, %s67
    %s71 = sphi 0, %s70
    %s87 = sphi 0, %s71
    %s93 = sphi 0, %s95
    %s96 = sphi 0, %s93
    %s97 = sphi 0, %s96
    %s113 = sphi 0, %s97
  $region4: #{_lambda_.2} parent=0 // loop_header_branch
    %13 = sbr.rel (%p11) target = $region8
  $region5: #{_lambda_.2} parent=0 // loop_body
    %s15 = ssub.s32 %s10, 1
    %s16 = ssub.s32 %s10, 2
    %s17 = sadd.s32 %s10, 1
    %s18 = ssub.s32 %s10, %s17
    %p19 = scmp.eq.s32.totalorder %s18, 0
    %s21 = sadd.s32 %s20, 1
    %s22 = scalar_select %p19, %s20, %s21
    %p25 = pneg %p19
    %p26 = scmp.eq.s32.totalorder %s10, 1
    %p27 = por %p25, %p26
    %p28 = scmp.ne.s32.totalorder %s20, %s23
    %p29 = scmp.eq.s32.totalorder %s10, 0
    %p30 = por %p28, %p29
    %p31 = scmp.ne.s32.totalorder %s20, %s23
    %p32 = scmp.eq.s32.totalorder %s15, 1
    %p33 = por %p31, %p32
    %p34 = scmp.ne.s32.totalorder %s23, %s24
    %p35 = scmp.eq.s32.totalorder %s15, 0
    %p36 = por %p34, %p35
    %p37 = scmp.ne.s32.totalorder %s23, %s24
    %p38 = scmp.eq.s32.totalorder %s16, 1
    %p39 = por %p37, %p38
    %p41 = scmp.ne.s32.totalorder %s24, %s40
    %p42 = scmp.eq.s32.totalorder %s16, 0
    %p43 = por %p41, %p42
    %s45 = sadd.s32 %s44, 1
    %p48 = scmp.eq.s32.totalorder %s10, 1
    %p49 = scmp.ne.s32.totalorder %s44, %s46
    %p50 = scmp.eq.s32.totalorder %s10, 0
    %p51 = por %p49, %p50
    %p52 = scmp.ne.s32.totalorder %s44, %s46
    %p53 = scmp.eq.s32.totalorder %s15, 1
    %p54 = por %p52, %p53
    %p55 = scmp.ne.s32.totalorder %s46, %s47
    %p56 = scmp.eq.s32.totalorder %s15, 0
    %p57 = por %p55, %p56
    %p58 = scmp.ne.s32.totalorder %s46, %s47
    %p59 = scmp.eq.s32.totalorder %s16, 1
    %p60 = por %p58, %p59
    %p62 = scmp.ne.s32.totalorder %s47, %s61
    %p63 = scmp.eq.s32.totalorder %s16, 0
    %p64 = por %p62, %p63
    %s65 = ssub.s32 %s10, %s17
    %p66 = scmp.eq.s32.totalorder %s65, 0
    %s68 = sadd.s32 %s67, 1
    %s69 = scalar_select %p66, %s67, %s68
    %p72 = pneg %p66
    %p73 = scmp.eq.s32.totalorder %s10, 1
    %p74 = por %p72, %p73
    %p75 = scmp.ne.s32.totalorder %s67, %s70
    %p76 = scmp.eq.s32.totalorder %s10, 0
    %p77 = por %p75, %p76
    %p78 = scmp.ne.s32.totalorder %s67, %s70
    %p79 = scmp.eq.s32.totalorder %s15, 1
    %p80 = por %p78, %p79
    %p81 = scmp.ne.s32.totalorder %s70, %s71
    %p82 = scmp.eq.s32.totalorder %s15, 0
    %p83 = por %p81, %p82
    %p84 = scmp.ne.s32.totalorder %s70, %s71
    %p85 = scmp.eq.s32.totalorder %s16, 1
    %p86 = por %p84, %p85
    %p88 = scmp.ne.s32.totalorder %s71, %s87
    %p89 = scmp.eq.s32.totalorder %s16, 0
    %p90 = por %p88, %p89
    %s91 = ssub.s32 %s10, %s17
    %p92 = scmp.eq.s32.totalorder %s91, 0
    %s94 = sadd.s32 %s93, 1
    %s95 = scalar_select %p92, %s93, %s94
    %p98 = pneg %p92
    %p99 = scmp.eq.s32.totalorder %s10, 1
    %p100 = por %p98, %p99
    %p101 = scmp.ne.s32.totalorder %s93, %s96
    %p102 = scmp.eq.s32.totalorder %s10, 0
    %p103 = por %p101, %p102
    %p104 = scmp.ne.s32.totalorder %s93, %s96
    %p105 = scmp.eq.s32.totalorder %s15, 1
    %p106 = por %p104, %p105
    %p107 = scmp.ne.s32.totalorder %s96, %s97
    %p108 = scmp.eq.s32.totalorder %s15, 0
    %p109 = por %p107, %p108
    %p110 = scmp.ne.s32.totalorder %s96, %s97
    %p111 = scmp.eq.s32.totalorder %s16, 1
    %p112 = por %p110, %p111
    %p114 = scmp.ne.s32.totalorder %s97, %s113
    %p115 = scmp.eq.s32.totalorder %s16, 0
    %p116 = por %p114, %p115
    %p117 = scmp.le.s32.totalorder 1, %s10
    %p118 = scmp.lt.s32.totalorder %s10, 3
    %p119 = pnand %p117, %p118
    %p120 = pneg %p119
    // Predicated region
    $region9: #{_lambda_.2} parent=5 // pred_check
      _
    $region10: #{_lambda_.2} parent=5 // pred_check_branch
      %122 = sbr.rel (%p119) target = $region12
    $region11: #{_lambda_.2} parent=5 // pred_region
      %s123 = ssub.s32 %s10, 1
      // Predicated region
      $region13: #{_lambda_.2} parent=11 // pred_check
        %p124 = pneg %p57
      $region14: #{_lambda_.2} parent=11 // pred_check_branch
        %126 = sbr.rel (%p124) target = $region16
      $region15: #{_lambda_.2} parent=11 // pred_region
        _
      $region16: #{_lambda_.2} parent=11 // pred_fallthru
        _
    $region12: #{_lambda_.2} parent=5 // pred_fallthru
      _
    %p127 = scmp.lt.s32.totalorder %s10, 2
    // Predicated region
    $region17: #{_lambda_.2} parent=5 // pred_check
      %p128 = pneg %p127
    $region18: #{_lambda_.2} parent=5 // pred_check_branch
      %130 = sbr.rel (%p128) target = $region20
    $region19: #{_lambda_.2} parent=5 // pred_region
      // Predicated region
      $region21: #{_lambda_.2} parent=19 // pred_check
        %p131 = pneg %p30
      $region22: #{_lambda_.2} parent=19 // pred_check_branch
        %133 = sbr.rel (%p131) target = $region24
      $region23: #{_lambda_.2} parent=19 // pred_region
        %p134 = scmp.lt.s32.totalorder %s10, 1
        %s135 = scalar_select %p134, %s10, 1
        %s136 = smul.addr %s135, 40
        %s137 = smul.addr %s136, 4
        %s138 = scalar_lea.vmem %s0, %s137
      $region24: #{_lambda_.2} parent=19 // pred_fallthru
        _
    $region20: #{_lambda_.2} parent=5 // pred_fallthru
      _
    %p139 = scmp.le.s32.totalorder 1, %s10
    %p140 = scmp.lt.s32.totalorder %s10, 3
    %p141 = pnand %p139, %p140
    %p142 = pneg %p141
    // Predicated region
    $region25: #{_lambda_.2} parent=5 // pred_check
      _
    $region26: #{_lambda_.2} parent=5 // pred_check_branch
      %144 = sbr.rel (%p141) target = $region28
    $region27: #{_lambda_.2} parent=5 // pred_region
      %s145 = ssub.s32 %s10, 1
      %p146 = scmp.lt.s32.totalorder %s15, 1
      %s147 = scalar_select %p146, %s15, 1
      %s148 = smul.addr %s147, 40
      %s149 = smul.addr %s148, 4
      %s150 = scalar_lea.vmem %s0, %s149
      %p151 = pneg %p36
      %p152 = pneg %p33
      %p153 = pneg %p57
      %p154 = pneg %p54
      %p155 = pneg %p83
      %p156 = pneg %p80
      %s157 = smul.u32 16, %s15
      %p158 = scmp.lt.s32.totalorder %s157, 31
      %s159 = scalar_select %p158, %s157, 31
      %s160 = smul.addr %s159, 4
      %s161 = scalar_lea.vmem %s2, %s160
      %p162 = pneg %p109
      %p163 = pneg %p106
      %p164 = scmp.lt.s32.totalorder %s15, 1
      %s165 = scalar_select %p164, %s15, 1
      %s166 = smul.addr %s165, 2
      %s167 = scalar_lea.vmem %s3, %s166
      %p168 = scmp.lt.s32.totalorder %s15, 1
      %s169 = scalar_select %p168, %s15, 1
      %s170 = smul.addr %s169, 40
      %s171 = smul.addr %s170, 4
      %s172 = scalar_lea.vmem %s0, %s171
      %s173 = smul.u32 16, %s15
      %p174 = scmp.lt.s32.totalorder %s173, 31
      %s175 = scalar_select %p174, %s173, 31
      %s176 = smul.addr %s175, 4
      %s177 = scalar_lea.vmem %s2, %s176
      %s178 = smul.u32 16, %s15
      %p179 = scmp.lt.s32.totalorder %s15, 1
      %s180 = scalar_select %p179, %s15, 1
      %s181 = smul.addr %s180, 2
      %s182 = scalar_lea.vmem %s3, %s181
      %v184 = vld [vmem:[%s172] sm:$0xff]
      %v185 = vld [vmem:[%s172 + $0x8] sm:$0xff]
      %v186 = vld [vmem:[%s172 + $0x10] sm:$0xff]
      %v187 = vld [vmem:[%s172 + $0x18] sm:$0xff]
      %v188 = vld [vmem:[%s172 + $0x20] sm:$0xff]
      %v189 = vld [vmem:[%s172 + $0x28] sm:$0xff]
      %v190 = vld [vmem:[%s172 + $0x30] sm:$0xff]
      %v191 = vld [vmem:[%s172 + $0x38] sm:$0xff]
      %v192 = vld [vmem:[%s172 + $0x40] sm:$0xff]
      %v193 = vld [vmem:[%s172 + $0x48] sm:$0xff]
      %v194 = vld [vmem:[%s172 + $0x50] sm:$0xff]
      %v195 = vld [vmem:[%s172 + $0x58] sm:$0xff]
      %v196 = vld [vmem:[%s172 + $0x60] sm:$0xff]
      %v197 = vld [vmem:[%s172 + $0x68] sm:$0xff]
      %v198 = vld [vmem:[%s172 + $0x70] sm:$0xff]
      %v199 = vld [vmem:[%s172 + $0x78] sm:$0xff]
      %v200 = vld [vmem:[%s1] sm:$0xf]
      %v201 = vld [vmem:[%s1 + $0x4] sm:$0xf]
      %v202 = vld [vmem:[%s1 + $0x8] sm:$0xf]
      %v203 = vld [vmem:[%s1 + $0xc] sm:$0xf]
      %v204 = vld [vmem:[%s1 + $0x10] sm:$0xf]
      %v205 = vld [vmem:[%s1 + $0x14] sm:$0xf]
      %v206 = vld [vmem:[%s1 + $0x18] sm:$0xf]
      %v207 = vld [vmem:[%s1 + $0x1c] sm:$0xf]
      %v208 = vld [vmem:[%s1 + $0x20] sm:$0xf]
      %v209 = vld [vmem:[%s1 + $0x24] sm:$0xf]
      %v210 = vld [vmem:[%s1 + $0x28] sm:$0xf]
      %v211 = vld [vmem:[%s1 + $0x2c] sm:$0xf]
      %v212 = vld [vmem:[%s1 + $0x30] sm:$0xf]
      %v213 = vld [vmem:[%s1 + $0x34] sm:$0xf]
      %v214 = vld [vmem:[%s1 + $0x38] sm:$0xf]
      %v215 = vld [vmem:[%s1 + $0x3c] sm:$0xf]
      %v216 = vld [vmem:[%s1 + $0x40] sm:$0xf]
      %v217 = vld [vmem:[%s1 + $0x44] sm:$0xf]
      %v218 = vld [vmem:[%s1 + $0x48] sm:$0xf]
      %v219 = vld [vmem:[%s1 + $0x4c] sm:$0xf]
      %v220 = vld [vmem:[%s1 + $0x50] sm:$0xf]
      %v221 = vld [vmem:[%s1 + $0x54] sm:$0xf]
      %v222 = vld [vmem:[%s1 + $0x58] sm:$0xf]
      %v223 = vld [vmem:[%s1 + $0x5c] sm:$0xf]
      %s224 = scalar_lea.vmem %s172, 16
      %v225 = vld [vmem:[%s224] sm:$0xff]
      %v226 = vld [vmem:[%s224 + $0x8] sm:$0xff]
      %v227 = vld [vmem:[%s224 + $0x10] sm:$0xff]
      %v228 = vld [vmem:[%s224 + $0x18] sm:$0xff]
      %v229 = vld [vmem:[%s224 + $0x20] sm:$0xff]
      %v230 = vld [vmem:[%s224 + $0x28] sm:$0xff]
      %v231 = vld [vmem:[%s224 + $0x30] sm:$0xff]
      %v232 = vld [vmem:[%s224 + $0x38] sm:$0xff]
      %v233 = vld [vmem:[%s224 + $0x40] sm:$0xff]
      %v234 = vld [vmem:[%s224 + $0x48] sm:$0xff]
      %v235 = vld [vmem:[%s224 + $0x50] sm:$0xff]
      %v236 = vld [vmem:[%s224 + $0x58] sm:$0xff]
      %v237 = vld [vmem:[%s224 + $0x60] sm:$0xff]
      %v238 = vld [vmem:[%s224 + $0x68] sm:$0xff]
      %v239 = vld [vmem:[%s224 + $0x70] sm:$0xff]
      %v240 = vld [vmem:[%s224 + $0x78] sm:$0xff]
      %s241 = scalar_lea.vmem %s1, 96
      %v242 = vld [vmem:[%s241] sm:$0xf]
      %v243 = vld [vmem:[%s241 + $0x4] sm:$0xf]
      %v244 = vld [vmem:[%s241 + $0x8] sm:$0xf]
      %v245 = vld [vmem:[%s241 + $0xc] sm:$0xf]
      %v246 = vld [vmem:[%s241 + $0x10] sm:$0xf]
      %v247 = vld [vmem:[%s241 + $0x14] sm:$0xf]
      %v248 = vld [vmem:[%s241 + $0x18] sm:$0xf]
      %v249 = vld [vmem:[%s241 + $0x1c] sm:$0xf]
      %v250 = vld [vmem:[%s241 + $0x20] sm:$0xf]
      %v251 = vld [vmem:[%s241 + $0x24] sm:$0xf]
      %v252 = vld [vmem:[%s241 + $0x28] sm:$0xf]
      %v253 = vld [vmem:[%s241 + $0x2c] sm:$0xf]
      %v254 = vld [vmem:[%s241 + $0x30] sm:$0xf]
      %v255 = vld [vmem:[%s241 + $0x34] sm:$0xf]
      %v256 = vld [vmem:[%s241 + $0x38] sm:$0xf]
      %v257 = vld [vmem:[%s241 + $0x3c] sm:$0xf]
      %v258 = vld [vmem:[%s241 + $0x40] sm:$0xf]
      %v259 = vld [vmem:[%s241 + $0x44] sm:$0xf]
      %v260 = vld [vmem:[%s241 + $0x48] sm:$0xf]
      %v261 = vld [vmem:[%s241 + $0x4c] sm:$0xf]
      %v262 = vld [vmem:[%s241 + $0x50] sm:$0xf]
      %v263 = vld [vmem:[%s241 + $0x54] sm:$0xf]
      %v264 = vld [vmem:[%s241 + $0x58] sm:$0xf]
      %v265 = vld [vmem:[%s241 + $0x5c] sm:$0xf]
      %v282 = vunpack.c.l.b16 %v225
      %v283 = vunpack.c.h.b16 %v225
      %v284 = vunpack.c.l.b16 %v226
      %v285 = vunpack.c.h.b16 %v226
      %v286 = vunpack.c.l.b16 %v227
      %v287 = vunpack.c.h.b16 %v227
      %v288 = vunpack.c.l.b16 %v228
      %v289 = vunpack.c.h.b16 %v228
      %v290 = vunpack.c.l.b16 %v229
      %v291 = vunpack.c.h.b16 %v229
      %v292 = vunpack.c.l.b16 %v230
      %v293 = vunpack.c.h.b16 %v230
      %v294 = vunpack.c.l.b16 %v231
      %v295 = vunpack.c.h.b16 %v231
      %v296 = vunpack.c.l.b16 %v232
      %v297 = vunpack.c.h.b16 %v232
      %v298 = vunpack.c.l.b16 %v233
      %v299 = vunpack.c.h.b16 %v233
      %v300 = vunpack.c.l.b16 %v234
      %v301 = vunpack.c.h.b16 %v234
      %v302 = vunpack.c.l.b16 %v235
      %v303 = vunpack.c.h.b16 %v235
      %v304 = vunpack.c.l.b16 %v236
      %v305 = vunpack.c.h.b16 %v236
      %v306 = vunpack.c.l.b16 %v237
      %v307 = vunpack.c.h.b16 %v237
      %v308 = vunpack.c.l.b16 %v238
      %v309 = vunpack.c.h.b16 %v238
      %v310 = vunpack.c.l.b16 %v239
      %v311 = vunpack.c.h.b16 %v239
      %v312 = vunpack.c.l.b16 %v240
      %v313 = vunpack.c.h.b16 %v240
      %v314 = vpack.c.b16 %v284, %v282
      %v315 = vpack.c.b16 %v285, %v283
      %v316 = vpack.c.b16 %v288, %v286
      %v317 = vpack.c.b16 %v289, %v287
      %v318 = vpack.c.b16 %v292, %v290
      %v319 = vpack.c.b16 %v293, %v291
      %v320 = vpack.c.b16 %v296, %v294
      %v321 = vpack.c.b16 %v297, %v295
      %v322 = vpack.c.b16 %v300, %v298
      %v323 = vpack.c.b16 %v301, %v299
      %v324 = vpack.c.b16 %v304, %v302
      %v325 = vpack.c.b16 %v305, %v303
      %v326 = vpack.c.b16 %v308, %v306
      %v327 = vpack.c.b16 %v309, %v307
      %v328 = vpack.c.b16 %v312, %v310
      %v329 = vpack.c.b16 %v313, %v311
      %v362 = vunpack.c.l.b16 %v242
      %v363 = vunpack.c.l.b16 %v243
      %v364 = vunpack.c.l.b16 %v244
      %v365 = vunpack.c.l.b16 %v245
      %v366 = vunpack.c.l.b16 %v246
      %v367 = vunpack.c.l.b16 %v247
      %v368 = vunpack.c.l.b16 %v248
      %v369 = vunpack.c.l.b16 %v249
      %v370 = vunpack.c.l.b16 %v250
      %v371 = vunpack.c.l.b16 %v251
      %v372 = vunpack.c.l.b16 %v252
      %v373 = vunpack.c.l.b16 %v253
      %v374 = vunpack.c.l.b16 %v254
      %v375 = vunpack.c.l.b16 %v255
      %v376 = vunpack.c.l.b16 %v256
      %v377 = vunpack.c.l.b16 %v257
      %v378 = vunpack.c.l.b16 %v258
      %v379 = vunpack.c.l.b16 %v259
      %v380 = vunpack.c.l.b16 %v260
      %v381 = vunpack.c.l.b16 %v261
      %v382 = vunpack.c.l.b16 %v262
      %v383 = vunpack.c.l.b16 %v263
      %v384 = vunpack.c.l.b16 %v264
      %v385 = vunpack.c.l.b16 %v265
      %v386 = vpack.c.b16 %v363, %v362
      %v387 = vpack.c.b16 %v365, %v364
      %v388 = vpack.c.b16 %v367, %v366
      %v389 = vpack.c.b16 %v369, %v368
      %v390 = vpack.c.b16 %v371, %v370
      %v391 = vpack.c.b16 %v373, %v372
      %v392 = vpack.c.b16 %v375, %v374
      %v393 = vpack.c.b16 %v377, %v376
      %v394 = vpack.c.b16 %v379, %v378
      %v395 = vpack.c.b16 %v381, %v380
      %v396 = vpack.c.b16 %v383, %v382
      %v397 = vpack.c.b16 %v385, %v384
      %vm410 = vcmask 523264
      %v412 = vsel %vm410, %v315, 0
      %v415 = vsel %vm410, %v317, 0
      %v418 = vsel %vm410, %v319, 0
      %v421 = vsel %vm410, %v321, 0
      %v424 = vsel %vm410, %v323, 0
      %v427 = vsel %vm410, %v325, 0
      %v430 = vsel %vm410, %v327, 0
      %v433 = vsel %vm410, %v329, 0
      %435 = vmatprep.subr.bf16.mxu0 0
      %436 = vmatpush1.bf16.msra.mxu0 %v393
      %437 = vmatprep.subr.bf16.mxu0 0
      %438 = vmatpush1.bf16.msra.mxu0 %v392
      %439 = vmatprep.subr.bf16.mxu0 0
      %440 = vmatpush1.bf16.msra.mxu0 %v391
      %441 = vmatprep.subr.bf16.mxu0 0
      %442 = vmatpush1.bf16.msra.mxu0 %v390
      %443 = vmatprep.subr.bf16.mxu0 0
      %444 = vmatpush1.bf16.msra.mxu0 %v389
      %445 = vmatprep.subr.bf16.mxu0 0
      %446 = vmatpush1.bf16.msra.mxu0 %v388
      %447 = vmatprep.subr.bf16.mxu0 0
      %448 = vmatpush1.bf16.msra.mxu0 %v387
      %449 = vmatprep.subr.bf16.mxu0 0
      %450 = vmatpush1.bf16.msra.mxu0 %v386
      %451 = vmatprep.subr.bf16.mxu0 0
      %452 = vmatpush2.bf16.msra.mxu0 0
      %453 = vmatprep.subr.bf16.mxu0 0
      %454 = vmatpush2.bf16.msra.mxu0 0
      %455 = vmatprep.subr.bf16.mxu0 0
      %456 = vmatpush2.bf16.msra.mxu0 0
      %457 = vmatprep.subr.bf16.mxu0 0
      %458 = vmatpush2.bf16.msra.mxu0 0
      %459 = vmatprep.subr.bf16.mxu0 0
      %460 = vmatpush2.bf16.msra.mxu0 %v397
      %461 = vmatprep.subr.bf16.mxu0 0
      %462 = vmatpush2.bf16.msra.mxu0 %v396
      %463 = vmatprep.subr.bf16.mxu0 0
      %464 = vmatpush2.bf16.msra.mxu0 %v395
      %465 = vmatprep.subr.bf16.mxu0 0
      %466 = vmatpush2.bf16.msra.mxu0 %v394
      %467 = vmatprep.mubr.bf16.mxu0 %v412
      %468 = vmatmul.mubr.bf16.gmra.mxu0 %v314
      %v469 = vpop.f32.mrf.mxu0
      %v470 = vadd.f32 0.0, %v469
      %v471 = vpop.f32.mrf.mxu0
      %v472 = vpop.f32.mrf.mxu0
      %v473 = vadd.f32 0.0, %v472
      %v474 = vpop.f32.mrf.mxu0
      %475 = vmatprep.mubr.bf16.mxu0 %v415
      %476 = vmatmul.mubr.bf16.gmra.mxu0 %v316
      %v477 = vpop.f32.mrf.mxu0
      %v478 = vadd.f32 0.0, %v477
      %v479 = vpop.f32.mrf.mxu0
      %v480 = vpop.f32.mrf.mxu0
      %v481 = vadd.f32 0.0, %v480
      %v482 = vpop.f32.mrf.mxu0
      %483 = vmatprep.mubr.bf16.mxu0 %v418
      %484 = vmatmul.mubr.bf16.gmra.mxu0 %v318
      %v485 = vpop.f32.mrf.mxu0
      %v486 = vadd.f32 0.0, %v485
      %v487 = vpop.f32.mrf.mxu0
      %v488 = vpop.f32.mrf.mxu0
      %v489 = vadd.f32 0.0, %v488
      %v490 = vpop.f32.mrf.mxu0
      %491 = vmatprep.mubr.bf16.mxu0 %v421
      %492 = vmatmul.mubr.bf16.gmra.mxu0 %v320
      %v493 = vpop.f32.mrf.mxu0
      %v494 = vadd.f32 0.0, %v493
      %v495 = vpop.f32.mrf.mxu0
      %v496 = vpop.f32.mrf.mxu0
      %v497 = vadd.f32 0.0, %v496
      %v498 = vpop.f32.mrf.mxu0
      %499 = vmatprep.mubr.bf16.mxu0 %v424
      %500 = vmatmul.mubr.bf16.gmra.mxu0 %v322
      %v501 = vpop.f32.mrf.mxu0
      %v502 = vadd.f32 0.0, %v501
      %v503 = vpop.f32.mrf.mxu0
      %v504 = vpop.f32.mrf.mxu0
      %v505 = vadd.f32 0.0, %v504
      %v506 = vpop.f32.mrf.mxu0
      %507 = vmatprep.mubr.bf16.mxu0 %v427
      %508 = vmatmul.mubr.bf16.gmra.mxu0 %v324
      %v509 = vpop.f32.mrf.mxu0
      %v510 = vadd.f32 0.0, %v509
      %v511 = vpop.f32.mrf.mxu0
      %v512 = vpop.f32.mrf.mxu0
      %v513 = vadd.f32 0.0, %v512
      %v514 = vpop.f32.mrf.mxu0
      %515 = vmatprep.mubr.bf16.mxu0 %v430
      %516 = vmatmul.mubr.bf16.gmra.mxu0 %v326
      %v517 = vpop.f32.mrf.mxu0
      %v518 = vadd.f32 0.0, %v517
      %v519 = vpop.f32.mrf.mxu0
      %v520 = vpop.f32.mrf.mxu0
      %v521 = vadd.f32 0.0, %v520
      %v522 = vpop.f32.mrf.mxu0
      %523 = vmatprep.mubr.bf16.mxu0 %v433
      %524 = vmatmul.mubr.bf16.gmra.mxu0 %v328
      %v525 = vpop.f32.mrf.mxu0
      %v526 = vadd.f32 0.0, %v525
      %v527 = vpop.f32.mrf.mxu0
      %v528 = vpop.f32.mrf.mxu0
      %v529 = vadd.f32 0.0, %v528
      %v530 = vpop.f32.mrf.mxu0
      %531 = vdwg.mxu0
      %v548 = vunpack.c.l.b16 %v184
      %v549 = vunpack.c.h.b16 %v184
      %v550 = vunpack.c.l.b16 %v185
      %v551 = vunpack.c.h.b16 %v185
      %v552 = vunpack.c.l.b16 %v186
      %v553 = vunpack.c.h.b16 %v186
      %v554 = vunpack.c.l.b16 %v187
      %v555 = vunpack.c.h.b16 %v187
      %v556 = vunpack.c.l.b16 %v188
      %v557 = vunpack.c.h.b16 %v188
      %v558 = vunpack.c.l.b16 %v189
      %v559 = vunpack.c.h.b16 %v189
      %v560 = vunpack.c.l.b16 %v190
      %v561 = vunpack.c.h.b16 %v190
      %v562 = vunpack.c.l.b16 %v191
      %v563 = vunpack.c.h.b16 %v191
      %v564 = vunpack.c.l.b16 %v192
      %v565 = vunpack.c.h.b16 %v192
      %v566 = vunpack.c.l.b16 %v193
      %v567 = vunpack.c.h.b16 %v193
      %v568 = vunpack.c.l.b16 %v194
      %v569 = vunpack.c.h.b16 %v194
      %v570 = vunpack.c.l.b16 %v195
      %v571 = vunpack.c.h.b16 %v195
      %v572 = vunpack.c.l.b16 %v196
      %v573 = vunpack.c.h.b16 %v196
      %v574 = vunpack.c.l.b16 %v197
      %v575 = vunpack.c.h.b16 %v197
      %v576 = vunpack.c.l.b16 %v198
      %v577 = vunpack.c.h.b16 %v198
      %v578 = vunpack.c.l.b16 %v199
      %v579 = vunpack.c.h.b16 %v199
      %v580 = vpack.c.b16 %v550, %v548
      %v581 = vpack.c.b16 %v551, %v549
      %v582 = vpack.c.b16 %v554, %v552
      %v583 = vpack.c.b16 %v555, %v553
      %v584 = vpack.c.b16 %v558, %v556
      %v585 = vpack.c.b16 %v559, %v557
      %v586 = vpack.c.b16 %v562, %v560
      %v587 = vpack.c.b16 %v563, %v561
      %v588 = vpack.c.b16 %v566, %v564
      %v589 = vpack.c.b16 %v567, %v565
      %v590 = vpack.c.b16 %v570, %v568
      %v591 = vpack.c.b16 %v571, %v569
      %v592 = vpack.c.b16 %v574, %v572
      %v593 = vpack.c.b16 %v575, %v573
      %v594 = vpack.c.b16 %v578, %v576
      %v595 = vpack.c.b16 %v579, %v577
      %v628 = vunpack.c.l.b16 %v200
      %v629 = vunpack.c.l.b16 %v201
      %v630 = vunpack.c.l.b16 %v202
      %v631 = vunpack.c.l.b16 %v203
      %v632 = vunpack.c.l.b16 %v204
      %v633 = vunpack.c.l.b16 %v205
      %v634 = vunpack.c.l.b16 %v206
      %v635 = vunpack.c.l.b16 %v207
      %v636 = vunpack.c.l.b16 %v208
      %v637 = vunpack.c.l.b16 %v209
      %v638 = vunpack.c.l.b16 %v210
      %v639 = vunpack.c.l.b16 %v211
      %v640 = vunpack.c.l.b16 %v212
      %v641 = vunpack.c.l.b16 %v213
      %v642 = vunpack.c.l.b16 %v214
      %v643 = vunpack.c.l.b16 %v215
      %v644 = vunpack.c.l.b16 %v216
      %v645 = vunpack.c.l.b16 %v217
      %v646 = vunpack.c.l.b16 %v218
      %v647 = vunpack.c.l.b16 %v219
      %v648 = vunpack.c.l.b16 %v220
      %v649 = vunpack.c.l.b16 %v221
      %v650 = vunpack.c.l.b16 %v222
      %v651 = vunpack.c.l.b16 %v223
      %v652 = vpack.c.b16 %v629, %v628
      %v653 = vpack.c.b16 %v631, %v630
      %v654 = vpack.c.b16 %v633, %v632
      %v655 = vpack.c.b16 %v635, %v634
      %v656 = vpack.c.b16 %v637, %v636
      %v657 = vpack.c.b16 %v639, %v638
      %v658 = vpack.c.b16 %v641, %v640
      %v659 = vpack.c.b16 %v643, %v642
      %v660 = vpack.c.b16 %v645, %v644
      %v661 = vpack.c.b16 %v647, %v646
      %v662 = vpack.c.b16 %v649, %v648
      %v663 = vpack.c.b16 %v651, %v650
      %v677 = vsel %vm410, %v581, 0
      %v680 = vsel %vm410, %v583, 0
      %v683 = vsel %vm410, %v585, 0
      %v686 = vsel %vm410, %v587, 0
      %v689 = vsel %vm410, %v589, 0
      %v692 = vsel %vm410, %v591, 0
      %v695 = vsel %vm410, %v593, 0
      %v698 = vsel %vm410, %v595, 0
      %700 = vmatprep.subr.bf16.mxu0 0
      %701 = vmatpush1.bf16.msra.mxu0 %v659
      %702 = vmatprep.subr.bf16.mxu0 0
      %703 = vmatpush1.bf16.msra.mxu0 %v658
      %704 = vmatprep.subr.bf16.mxu0 0
      %705 = vmatpush1.bf16.msra.mxu0 %v657
      %706 = vmatprep.subr.bf16.mxu0 0
      %707 = vmatpush1.bf16.msra.mxu0 %v656
      %708 = vmatprep.subr.bf16.mxu0 0
      %709 = vmatpush1.bf16.msra.mxu0 %v655
      %710 = vmatprep.subr.bf16.mxu0 0
      %711 = vmatpush1.bf16.msra.mxu0 %v654
      %712 = vmatprep.subr.bf16.mxu0 0
      %713 = vmatpush1.bf16.msra.mxu0 %v653
      %714 = vmatprep.subr.bf16.mxu0 0
      %715 = vmatpush1.bf16.msra.mxu0 %v652
      %716 = vmatprep.subr.bf16.mxu0 0
      %717 = vmatpush2.bf16.msra.mxu0 0
      %718 = vmatprep.subr.bf16.mxu0 0
      %719 = vmatpush2.bf16.msra.mxu0 0
      %720 = vmatprep.subr.bf16.mxu0 0
      %721 = vmatpush2.bf16.msra.mxu0 0
      %722 = vmatprep.subr.bf16.mxu0 0
      %723 = vmatpush2.bf16.msra.mxu0 0
      %724 = vmatprep.subr.bf16.mxu0 0
      %725 = vmatpush2.bf16.msra.mxu0 %v663
      %726 = vmatprep.subr.bf16.mxu0 0
      %727 = vmatpush2.bf16.msra.mxu0 %v662
      %728 = vmatprep.subr.bf16.mxu0 0
      %729 = vmatpush2.bf16.msra.mxu0 %v661
      %730 = vmatprep.subr.bf16.mxu0 0
      %731 = vmatpush2.bf16.msra.mxu0 %v660
      %732 = vmatprep.mubr.bf16.mxu0 %v677
      %733 = vmatmul.mubr.bf16.gmra.mxu0 %v580
      %v734 = vpop.f32.mrf.mxu0
      %v735 = vadd.f32 %v470, %v734
      %v736 = vpop.f32.mrf.mxu0
      %v737 = vpop.f32.mrf.mxu0
      %v738 = vadd.f32 %v473, %v737
      %v739 = vpop.f32.mrf.mxu0
      %740 = vmatprep.mubr.bf16.mxu0 %v680
      %741 = vmatmul.mubr.bf16.gmra.mxu0 %v582
      %v742 = vpop.f32.mrf.mxu0
      %v743 = vadd.f32 %v478, %v742
      %v744 = vpop.f32.mrf.mxu0
      %v745 = vpop.f32.mrf.mxu0
      %v746 = vadd.f32 %v481, %v745
      %v747 = vpop.f32.mrf.mxu0
      %748 = vmatprep.mubr.bf16.mxu0 %v683
      %749 = vmatmul.mubr.bf16.gmra.mxu0 %v584
      %v750 = vpop.f32.mrf.mxu0
      %v751 = vadd.f32 %v486, %v750
      %v752 = vpop.f32.mrf.mxu0
      %v753 = vpop.f32.mrf.mxu0
      %v754 = vadd.f32 %v489, %v753
      %v755 = vpop.f32.mrf.mxu0
      %756 = vmatprep.mubr.bf16.mxu0 %v686
      %757 = vmatmul.mubr.bf16.gmra.mxu0 %v586
      %v758 = vpop.f32.mrf.mxu0
      %v759 = vadd.f32 %v494, %v758
      %v760 = vpop.f32.mrf.mxu0
      %v761 = vpop.f32.mrf.mxu0
      %v762 = vadd.f32 %v497, %v761
      %v763 = vpop.f32.mrf.mxu0
      %764 = vmatprep.mubr.bf16.mxu0 %v689
      %765 = vmatmul.mubr.bf16.gmra.mxu0 %v588
      %v766 = vpop.f32.mrf.mxu0
      %v767 = vadd.f32 %v502, %v766
      %v768 = vpop.f32.mrf.mxu0
      %v769 = vpop.f32.mrf.mxu0
      %v770 = vadd.f32 %v505, %v769
      %v771 = vpop.f32.mrf.mxu0
      %772 = vmatprep.mubr.bf16.mxu0 %v692
      %773 = vmatmul.mubr.bf16.gmra.mxu0 %v590
      %v774 = vpop.f32.mrf.mxu0
      %v775 = vadd.f32 %v510, %v774
      %v776 = vpop.f32.mrf.mxu0
      %v777 = vpop.f32.mrf.mxu0
      %v778 = vadd.f32 %v513, %v777
      %v779 = vpop.f32.mrf.mxu0
      %780 = vmatprep.mubr.bf16.mxu0 %v695
      %781 = vmatmul.mubr.bf16.gmra.mxu0 %v592
      %v782 = vpop.f32.mrf.mxu0
      %v783 = vadd.f32 %v518, %v782
      %v784 = vpop.f32.mrf.mxu0
      %v785 = vpop.f32.mrf.mxu0
      %v786 = vadd.f32 %v521, %v785
      %v787 = vpop.f32.mrf.mxu0
      %788 = vmatprep.mubr.bf16.mxu0 %v698
      %789 = vmatmul.mubr.bf16.gmra.mxu0 %v594
      %v790 = vpop.f32.mrf.mxu0
      %v791 = vadd.f32 %v526, %v790
      %v792 = vpop.f32.mrf.mxu0
      %v793 = vpop.f32.mrf.mxu0
      %v794 = vadd.f32 %v529, %v793
      %v795 = vpop.f32.mrf.mxu0
      %796 = vdwg.mxu0
      %s797 = scalar_lea.vmem %s172, 32
      %v798 = vld [vmem:[%s797] sm:$0xff]
      %v799 = vld [vmem:[%s797 + $0x8] sm:$0xff]
      %v800 = vld [vmem:[%s797 + $0x10] sm:$0xff]
      %v801 = vld [vmem:[%s797 + $0x18] sm:$0xff]
      %v802 = vld [vmem:[%s797 + $0x20] sm:$0xff]
      %v803 = vld [vmem:[%s797 + $0x28] sm:$0xff]
      %v804 = vld [vmem:[%s797 + $0x30] sm:$0xff]
      %v805 = vld [vmem:[%s797 + $0x38] sm:$0xff]
      %v806 = vld [vmem:[%s797 + $0x40] sm:$0xff]
      %v807 = vld [vmem:[%s797 + $0x48] sm:$0xff]
      %v808 = vld [vmem:[%s797 + $0x50] sm:$0xff]
      %v809 = vld [vmem:[%s797 + $0x58] sm:$0xff]
      %v810 = vld [vmem:[%s797 + $0x60] sm:$0xff]
      %v811 = vld [vmem:[%s797 + $0x68] sm:$0xff]
      %v812 = vld [vmem:[%s797 + $0x70] sm:$0xff]
      %v813 = vld [vmem:[%s797 + $0x78] sm:$0xff]
      %s814 = scalar_lea.vmem %s1, 192
      %v815 = vld [vmem:[%s814] sm:$0xf]
      %v816 = vld [vmem:[%s814 + $0x4] sm:$0xf]
      %v817 = vld [vmem:[%s814 + $0x8] sm:$0xf]
      %v818 = vld [vmem:[%s814 + $0xc] sm:$0xf]
      %v819 = vld [vmem:[%s814 + $0x10] sm:$0xf]
      %v820 = vld [vmem:[%s814 + $0x14] sm:$0xf]
      %v821 = vld [vmem:[%s814 + $0x18] sm:$0xf]
      %v822 = vld [vmem:[%s814 + $0x1c] sm:$0xf]
      %v823 = vld [vmem:[%s814 + $0x20] sm:$0xf]
      %v824 = vld [vmem:[%s814 + $0x24] sm:$0xf]
      %v825 = vld [vmem:[%s814 + $0x28] sm:$0xf]
      %v826 = vld [vmem:[%s814 + $0x2c] sm:$0xf]
      %v827 = vld [vmem:[%s814 + $0x30] sm:$0xf]
      %v828 = vld [vmem:[%s814 + $0x34] sm:$0xf]
      %v829 = vld [vmem:[%s814 + $0x38] sm:$0xf]
      %v830 = vld [vmem:[%s814 + $0x3c] sm:$0xf]
      %v831 = vld [vmem:[%s814 + $0x40] sm:$0xf]
      %v832 = vld [vmem:[%s814 + $0x44] sm:$0xf]
      %v833 = vld [vmem:[%s814 + $0x48] sm:$0xf]
      %v834 = vld [vmem:[%s814 + $0x4c] sm:$0xf]
      %v835 = vld [vmem:[%s814 + $0x50] sm:$0xf]
      %v836 = vld [vmem:[%s814 + $0x54] sm:$0xf]
      %v837 = vld [vmem:[%s814 + $0x58] sm:$0xf]
      %v838 = vld [vmem:[%s814 + $0x5c] sm:$0xf]
      %v855 = vunpack.c.l.b16 %v798
      %v856 = vunpack.c.h.b16 %v798
      %v857 = vunpack.c.l.b16 %v799
      %v858 = vunpack.c.h.b16 %v799
      %v859 = vunpack.c.l.b16 %v800
      %v860 = vunpack.c.h.b16 %v800
      %v861 = vunpack.c.l.b16 %v801
      %v862 = vunpack.c.h.b16 %v801
      %v863 = vunpack.c.l.b16 %v802
      %v864 = vunpack.c.h.b16 %v802
      %v865 = vunpack.c.l.b16 %v803
      %v866 = vunpack.c.h.b16 %v803
      %v867 = vunpack.c.l.b16 %v804
      %v868 = vunpack.c.h.b16 %v804
      %v869 = vunpack.c.l.b16 %v805
      %v870 = vunpack.c.h.b16 %v805
      %v871 = vunpack.c.l.b16 %v806
      %v872 = vunpack.c.h.b16 %v806
      %v873 = vunpack.c.l.b16 %v807
      %v874 = vunpack.c.h.b16 %v807
      %v875 = vunpack.c.l.b16 %v808
      %v876 = vunpack.c.h.b16 %v808
      %v877 = vunpack.c.l.b16 %v809
      %v878 = vunpack.c.h.b16 %v809
      %v879 = vunpack.c.l.b16 %v810
      %v880 = vunpack.c.h.b16 %v810
      %v881 = vunpack.c.l.b16 %v811
      %v882 = vunpack.c.h.b16 %v811
      %v883 = vunpack.c.l.b16 %v812
      %v884 = vunpack.c.h.b16 %v812
      %v885 = vunpack.c.l.b16 %v813
      %v886 = vunpack.c.h.b16 %v813
      %v887 = vpack.c.b16 %v857, %v855
      %v888 = vpack.c.b16 %v858, %v856
      %v889 = vpack.c.b16 %v861, %v859
      %v890 = vpack.c.b16 %v862, %v860
      %v891 = vpack.c.b16 %v865, %v863
      %v892 = vpack.c.b16 %v866, %v864
      %v893 = vpack.c.b16 %v869, %v867
      %v894 = vpack.c.b16 %v870, %v868
      %v895 = vpack.c.b16 %v873, %v871
      %v896 = vpack.c.b16 %v874, %v872
      %v897 = vpack.c.b16 %v877, %v875
      %v898 = vpack.c.b16 %v878, %v876
      %v899 = vpack.c.b16 %v881, %v879
      %v900 = vpack.c.b16 %v882, %v880
      %v901 = vpack.c.b16 %v885, %v883
      %v902 = vpack.c.b16 %v886, %v884
      %v935 = vunpack.c.l.b16 %v815
      %v936 = vunpack.c.l.b16 %v816
      %v937 = vunpack.c.l.b16 %v817
      %v938 = vunpack.c.l.b16 %v818
      %v939 = vunpack.c.l.b16 %v819
      %v940 = vunpack.c.l.b16 %v820
      %v941 = vunpack.c.l.b16 %v821
      %v942 = vunpack.c.l.b16 %v822
      %v943 = vunpack.c.l.b16 %v823
      %v944 = vunpack.c.l.b16 %v824
      %v945 = vunpack.c.l.b16 %v825
      %v946 = vunpack.c.l.b16 %v826
      %v947 = vunpack.c.l.b16 %v827
      %v948 = vunpack.c.l.b16 %v828
      %v949 = vunpack.c.l.b16 %v829
      %v950 = vunpack.c.l.b16 %v830
      %v951 = vunpack.c.l.b16 %v831
      %v952 = vunpack.c.l.b16 %v832
      %v953 = vunpack.c.l.b16 %v833
      %v954 = vunpack.c.l.b16 %v834
      %v955 = vunpack.c.l.b16 %v835
      %v956 = vunpack.c.l.b16 %v836
      %v957 = vunpack.c.l.b16 %v837
      %v958 = vunpack.c.l.b16 %v838
      %v959 = vpack.c.b16 %v936, %v935
      %v960 = vpack.c.b16 %v938, %v937
      %v961 = vpack.c.b16 %v940, %v939
      %v962 = vpack.c.b16 %v942, %v941
      %v963 = vpack.c.b16 %v944, %v943
      %v964 = vpack.c.b16 %v946, %v945
      %v965 = vpack.c.b16 %v948, %v947
      %v966 = vpack.c.b16 %v950, %v949
      %v967 = vpack.c.b16 %v952, %v951
      %v968 = vpack.c.b16 %v954, %v953
      %v969 = vpack.c.b16 %v956, %v955
      %v970 = vpack.c.b16 %v958, %v957
      %v984 = vsel %vm410, %v888, 0
      %v987 = vsel %vm410, %v890, 0
      %v990 = vsel %vm410, %v892, 0
      %v993 = vsel %vm410, %v894, 0
      %v996 = vsel %vm410, %v896, 0
      %v999 = vsel %vm410, %v898, 0
      %v1002 = vsel %vm410, %v900, 0
      %v1005 = vsel %vm410, %v902, 0
      %1007 = vmatprep.subr.bf16.mxu0 0
      %1008 = vmatpush1.bf16.msra.mxu0 %v966
      %1009 = vmatprep.subr.bf16.mxu0 0
      %1010 = vmatpush1.bf16.msra.mxu0 %v965
      %1011 = vmatprep.subr.bf16.mxu0 0
      %1012 = vmatpush1.bf16.msra.mxu0 %v964
      %1013 = vmatprep.subr.bf16.mxu0 0
      %1014 = vmatpush1.bf16.msra.mxu0 %v963
      %1015 = vmatprep.subr.bf16.mxu0 0
      %1016 = vmatpush1.bf16.msra.mxu0 %v962
      %1017 = vmatprep.subr.bf16.mxu0 0
      %1018 = vmatpush1.bf16.msra.mxu0 %v961
      %1019 = vmatprep.subr.bf16.mxu0 0
      %1020 = vmatpush1.bf16.msra.mxu0 %v960
      %1021 = vmatprep.subr.bf16.mxu0 0
      %1022 = vmatpush1.bf16.msra.mxu0 %v959
      %1023 = vmatprep.subr.bf16.mxu0 0
      %1024 = vmatpush2.bf16.msra.mxu0 0
      %1025 = vmatprep.subr.bf16.mxu0 0
      %1026 = vmatpush2.bf16.msra.mxu0 0
      %1027 = vmatprep.subr.bf16.mxu0 0
      %1028 = vmatpush2.bf16.msra.mxu0 0
      %1029 = vmatprep.subr.bf16.mxu0 0
      %1030 = vmatpush2.bf16.msra.mxu0 0
      %1031 = vmatprep.subr.bf16.mxu0 0
      %1032 = vmatpush2.bf16.msra.mxu0 %v970
      %1033 = vmatprep.subr.bf16.mxu0 0
      %1034 = vmatpush2.bf16.msra.mxu0 %v969
      %1035 = vmatprep.subr.bf16.mxu0 0
      %1036 = vmatpush2.bf16.msra.mxu0 %v968
      %1037 = vmatprep.subr.bf16.mxu0 0
      %1038 = vmatpush2.bf16.msra.mxu0 %v967
      %1039 = vmatprep.mubr.bf16.mxu0 %v984
      %1040 = vmatmul.mubr.bf16.gmra.mxu0 %v887
      %v1041 = vpop.f32.mrf.mxu0
      %v1042 = vadd.f32 0.0, %v1041
      %v1043 = vpop.f32.mrf.mxu0
      %v1044 = vpop.f32.mrf.mxu0
      %v1045 = vadd.f32 0.0, %v1044
      %v1046 = vpop.f32.mrf.mxu0
      %1047 = vmatprep.mubr.bf16.mxu0 %v987
      %1048 = vmatmul.mubr.bf16.gmra.mxu0 %v889
      %v1049 = vpop.f32.mrf.mxu0
      %v1050 = vadd.f32 0.0, %v1049
      %v1051 = vpop.f32.mrf.mxu0
      %v1052 = vpop.f32.mrf.mxu0
      %v1053 = vadd.f32 0.0, %v1052
      %v1054 = vpop.f32.mrf.mxu0
      %1055 = vmatprep.mubr.bf16.mxu0 %v990
      %1056 = vmatmul.mubr.bf16.gmra.mxu0 %v891
      %v1057 = vpop.f32.mrf.mxu0
      %v1058 = vadd.f32 0.0, %v1057
      %v1059 = vpop.f32.mrf.mxu0
      %v1060 = vpop.f32.mrf.mxu0
      %v1061 = vadd.f32 0.0, %v1060
      %v1062 = vpop.f32.mrf.mxu0
      %1063 = vmatprep.mubr.bf16.mxu0 %v993
      %1064 = vmatmul.mubr.bf16.gmra.mxu0 %v893
      %v1065 = vpop.f32.mrf.mxu0
      %v1066 = vadd.f32 0.0, %v1065
      %v1067 = vpop.f32.mrf.mxu0
      %v1068 = vpop.f32.mrf.mxu0
      %v1069 = vadd.f32 0.0, %v1068
      %v1070 = vpop.f32.mrf.mxu0
      %1071 = vmatprep.mubr.bf16.mxu0 %v996
      %1072 = vmatmul.mubr.bf16.gmra.mxu0 %v895
      %v1073 = vpop.f32.mrf.mxu0
      %v1074 = vadd.f32 0.0, %v1073
      %v1075 = vpop.f32.mrf.mxu0
      %v1076 = vpop.f32.mrf.mxu0
      %v1077 = vadd.f32 0.0, %v1076
      %v1078 = vpop.f32.mrf.mxu0
      %1079 = vmatprep.mubr.bf16.mxu0 %v999
      %1080 = vmatmul.mubr.bf16.gmra.mxu0 %v897
      %v1081 = vpop.f32.mrf.mxu0
      %v1082 = vadd.f32 0.0, %v1081
      %v1083 = vpop.f32.mrf.mxu0
      %v1084 = vpop.f32.mrf.mxu0
      %v1085 = vadd.f32 0.0, %v1084
      %v1086 = vpop.f32.mrf.mxu0
      %1087 = vmatprep.mubr.bf16.mxu0 %v1002
      %1088 = vmatmul.mubr.bf16.gmra.mxu0 %v899
      %v1089 = vpop.f32.mrf.mxu0
      %v1090 = vadd.f32 0.0, %v1089
      %v1091 = vpop.f32.mrf.mxu0
      %v1092 = vpop.f32.mrf.mxu0
      %v1093 = vadd.f32 0.0, %v1092
      %v1094 = vpop.f32.mrf.mxu0
      %1095 = vmatprep.mubr.bf16.mxu0 %v1005
      %1096 = vmatmul.mubr.bf16.gmra.mxu0 %v901
      %v1097 = vpop.f32.mrf.mxu0
      %v1098 = vadd.f32 0.0, %v1097
      %v1099 = vpop.f32.mrf.mxu0
      %v1100 = vpop.f32.mrf.mxu0
      %v1101 = vadd.f32 0.0, %v1100
      %v1102 = vpop.f32.mrf.mxu0
      %1103 = vdwg.mxu0
      %v1104 = vadd.f32 %v735, %v1042
      %v1105 = vadd.f32 %v738, %v1045
      %v1106 = vadd.f32 %v743, %v1050
      %v1107 = vadd.f32 %v746, %v1053
      %v1108 = vadd.f32 %v751, %v1058
      %v1109 = vadd.f32 %v754, %v1061
      %v1110 = vadd.f32 %v759, %v1066
      %v1111 = vadd.f32 %v762, %v1069
      %v1112 = vadd.f32 %v767, %v1074
      %v1113 = vadd.f32 %v770, %v1077
      %v1114 = vadd.f32 %v775, %v1082
      %v1115 = vadd.f32 %v778, %v1085
      %v1116 = vadd.f32 %v783, %v1090
      %v1117 = vadd.f32 %v786, %v1093
      %v1118 = vadd.f32 %v791, %v1098
      %v1119 = vadd.f32 %v794, %v1101
      %v1120 = vpack.c.bf16 %v1105, %v1104
      %v1121 = vpack.c.bf16 %v1107, %v1106
      %v1122 = vpack.c.bf16 %v1109, %v1108
      %v1123 = vpack.c.bf16 %v1111, %v1110
      %v1124 = vpack.c.bf16 %v1113, %v1112
      %v1125 = vpack.c.bf16 %v1115, %v1114
      %v1126 = vpack.c.bf16 %v1117, %v1116
      %v1127 = vpack.c.bf16 %v1119, %v1118
      %v1136 = vunpack.c.l.b16 %v1120
      %v1137 = vunpack.c.h.b16 %v1120
      %v1138 = vunpack.c.l.b16 %v1121
      %v1139 = vunpack.c.h.b16 %v1121
      %v1140 = vunpack.c.l.b16 %v1122
      %v1141 = vunpack.c.h.b16 %v1122
      %v1142 = vunpack.c.l.b16 %v1123
      %v1143 = vunpack.c.h.b16 %v1123
      %v1144 = vunpack.c.l.b16 %v1124
      %v1145 = vunpack.c.h.b16 %v1124
      %v1146 = vunpack.c.l.b16 %v1125
      %v1147 = vunpack.c.h.b16 %v1125
      %v1148 = vunpack.c.l.b16 %v1126
      %v1149 = vunpack.c.h.b16 %v1126
      %v1150 = vunpack.c.l.b16 %v1127
      %v1151 = vunpack.c.h.b16 %v1127
      %v1152 = vpack.c.b16 %v1136, %v1136
      %v1153 = vpack.c.b16 %v1137, %v1137
      %v1154 = vpack.c.b16 %v1138, %v1138
      %v1155 = vpack.c.b16 %v1139, %v1139
      %v1156 = vpack.c.b16 %v1140, %v1140
      %v1157 = vpack.c.b16 %v1141, %v1141
      %v1158 = vpack.c.b16 %v1142, %v1142
      %v1159 = vpack.c.b16 %v1143, %v1143
      %v1160 = vpack.c.b16 %v1144, %v1144
      %v1161 = vpack.c.b16 %v1145, %v1145
      %v1162 = vpack.c.b16 %v1146, %v1146
      %v1163 = vpack.c.b16 %v1147, %v1147
      %v1164 = vpack.c.b16 %v1148, %v1148
      %v1165 = vpack.c.b16 %v1149, %v1149
      %v1166 = vpack.c.b16 %v1150, %v1150
      %v1167 = vpack.c.b16 %v1151, %v1151
      %1184 = vst [vmem:[%s177] sm:$0xf] %v1152
      %1185 = vst [vmem:[%s177 + $0x4] sm:$0xf] %v1153
      %1186 = vst [vmem:[%s177 + $0x8] sm:$0xf] %v1154
      %1187 = vst [vmem:[%s177 + $0xc] sm:$0xf] %v1155
      %1188 = vst [vmem:[%s177 + $0x10] sm:$0xf] %v1156
      %1189 = vst [vmem:[%s177 + $0x14] sm:$0xf] %v1157
      %1190 = vst [vmem:[%s177 + $0x18] sm:$0xf] %v1158
      %1191 = vst [vmem:[%s177 + $0x1c] sm:$0xf] %v1159
      %1192 = vst [vmem:[%s177 + $0x20] sm:$0xf] %v1160
      %1193 = vst [vmem:[%s177 + $0x24] sm:$0xf] %v1161
      %1194 = vst [vmem:[%s177 + $0x28] sm:$0xf] %v1162
      %1195 = vst [vmem:[%s177 + $0x2c] sm:$0xf] %v1163
      %1196 = vst [vmem:[%s177 + $0x30] sm:$0xf] %v1164
      %1197 = vst [vmem:[%s177 + $0x34] sm:$0xf] %v1165
      %1198 = vst [vmem:[%s177 + $0x38] sm:$0xf] %v1166
      %1199 = vst [vmem:[%s177 + $0x3c] sm:$0xf] %v1167
      %v1200 = vadd.f32 %v1104, %v1105
      %v1201 = vadd.f32 %v1200, %v1106
      %v1202 = vadd.f32 %v1201, %v1107
      %v1203 = vadd.f32 %v1202, %v1108
      %v1204 = vadd.f32 %v1203, %v1109
      %v1205 = vadd.f32 %v1204, %v1110
      %v1206 = vadd.f32 %v1205, %v1111
      %v1207 = vadd.f32 %v1206, %v1112
      %v1208 = vadd.f32 %v1207, %v1113
      %v1209 = vadd.f32 %v1208, %v1114
      %v1210 = vadd.f32 %v1209, %v1115
      %v1211 = vadd.f32 %v1210, %v1116
      %v1212 = vadd.f32 %v1211, %v1117
      %v1213 = vadd.f32 %v1212, %v1118
      %v1214 = vadd.f32 %v1213, %v1119
      %v1215 = vrot.slane %v1214, 4
      %v1216 = vadd.f32 %v1214, %v1215
      %v1217 = vrot.slane %v1216, 2
      %v1218 = vadd.f32 %v1216, %v1217
      %v1219 = vrot.slane %v1218, 1
      %v1220 = vadd.f32 %v1218, %v1219
      %v1221 = vmul.f32 %v1220, 0.0078125
      %v1222 = vsub.f32 %v1104, %v1221
      %v1223 = vsub.f32 %v1105, %v1221
      %v1224 = vsub.f32 %v1106, %v1221
      %v1225 = vsub.f32 %v1107, %v1221
      %v1226 = vsub.f32 %v1108, %v1221
      %v1227 = vsub.f32 %v1109, %v1221
      %v1228 = vsub.f32 %v1110, %v1221
      %v1229 = vsub.f32 %v1111, %v1221
      %v1230 = vsub.f32 %v1112, %v1221
      %v1231 = vsub.f32 %v1113, %v1221
      %v1232 = vsub.f32 %v1114, %v1221
      %v1233 = vsub.f32 %v1115, %v1221
      %v1234 = vsub.f32 %v1116, %v1221
      %v1235 = vsub.f32 %v1117, %v1221
      %v1236 = vsub.f32 %v1118, %v1221
      %v1237 = vsub.f32 %v1119, %v1221
      %v1238 = vmul.f32 %v1222, %v1222
      %v1239 = vmul.f32 %v1223, %v1223
      %v1240 = vmul.f32 %v1224, %v1224
      %v1241 = vmul.f32 %v1225, %v1225
      %v1242 = vmul.f32 %v1226, %v1226
      %v1243 = vmul.f32 %v1227, %v1227
      %v1244 = vmul.f32 %v1228, %v1228
      %v1245 = vmul.f32 %v1229, %v1229
      %v1246 = vmul.f32 %v1230, %v1230
      %v1247 = vmul.f32 %v1231, %v1231
      %v1248 = vmul.f32 %v1232, %v1232
      %v1249 = vmul.f32 %v1233, %v1233
      %v1250 = vmul.f32 %v1234, %v1234
      %v1251 = vmul.f32 %v1235, %v1235
      %v1252 = vmul.f32 %v1236, %v1236
      %v1253 = vmul.f32 %v1237, %v1237
      %v1254 = vadd.f32 %v1238, %v1239
      %v1255 = vadd.f32 %v1254, %v1240
      %v1256 = vadd.f32 %v1255, %v1241
      %v1257 = vadd.f32 %v1256, %v1242
      %v1258 = vadd.f32 %v1257, %v1243
      %v1259 = vadd.f32 %v1258, %v1244
      %v1260 = vadd.f32 %v1259, %v1245
      %v1261 = vadd.f32 %v1260, %v1246
      %v1262 = vadd.f32 %v1261, %v1247
      %v1263 = vadd.f32 %v1262, %v1248
      %v1264 = vadd.f32 %v1263, %v1249
      %v1265 = vadd.f32 %v1264, %v1250
      %v1266 = vadd.f32 %v1265, %v1251
      %v1267 = vadd.f32 %v1266, %v1252
      %v1268 = vadd.f32 %v1267, %v1253
      %v1269 = vrot.slane %v1268, 4
      %v1270 = vadd.f32 %v1268, %v1269
      %v1271 = vrot.slane %v1270, 2
      %v1272 = vadd.f32 %v1270, %v1271
      %v1273 = vrot.slane %v1272, 1
      %v1274 = vadd.f32 %v1272, %v1273
      %vm1275 = vcmask 1040384
      %v1276 = vsel %vm1275, %v1220, %v1274
      %1277 = vst [vmem:[%s182] sm:$0x3] %v1276
      %s1278 = smul.u32 16, %s15
      %p1279 = scmp.lt.s32.totalorder %s1278, 31
      %s1280 = scalar_select %p1279, %s1278, 31
      %s1281 = smul.addr %s1280, 4
      %s1282 = scalar_lea.vmem %s2, %s1281
      %p1283 = scmp.lt.s32.totalorder %s15, 1
      %s1284 = scalar_select %p1283, %s15, 1
      %s1285 = smul.addr %s1284, 2
      %s1286 = scalar_lea.vmem %s3, %s1285
      // Predicated region
      $region29: #{_lambda_.2} parent=27 // pred_check
        %p1287 = pneg %p80
      $region30: #{_lambda_.2} parent=27 // pred_check_branch
        %1289 = sbr.rel (%p1287) target = $region32
      $region31: #{_lambda_.2} parent=27 // pred_region
        %s1290 = smul.u32 16, %s15
      $region32: #{_lambda_.2} parent=27 // pred_fallthru
        _
      // Predicated region
      $region33: #{_lambda_.2} parent=27 // pred_check
        %p1291 = pneg %p106
      $region34: #{_lambda_.2} parent=27 // pred_check_branch
        %1293 = sbr.rel (%p1291) target = $region36
      $region35: #{_lambda_.2} parent=27 // pred_region
        _
      $region36: #{_lambda_.2} parent=27 // pred_fallthru
        _
    $region28: #{_lambda_.2} parent=5 // pred_fallthru
      _
    %p1294 = scmp.le.s32.totalorder 2, %s10
    // Predicated region
    $region37: #{_lambda_.2} parent=5 // pred_check
      %p1295 = pneg %p1294
    $region38: #{_lambda_.2} parent=5 // pred_check_branch
      %1297 = sbr.rel (%p1295) target = $region40
    $region39: #{_lambda_.2} parent=5 // pred_region
      %s1298 = ssub.s32 %s10, 2
      // Predicated region
      $region41: #{_lambda_.2} parent=39 // pred_check
        %p1299 = pneg %p86
      $region42: #{_lambda_.2} parent=39 // pred_check_branch
        %1301 = sbr.rel (%p1299) target = $region44
      $region43: #{_lambda_.2} parent=39 // pred_region
        %s1302 = smul.u32 16, %s16
        %p1303 = scmp.lt.s32.totalorder %s1302, 31
        %s1304 = scalar_select %p1303, %s1302, 31
        %s1305 = smul.addr %s1304, 4
        %s1306 = scalar_lea.vmem %s2, %s1305
      $region44: #{_lambda_.2} parent=39 // pred_fallthru
        _
      // Predicated region
      $region45: #{_lambda_.2} parent=39 // pred_check
        %p1307 = pneg %p112
      $region46: #{_lambda_.2} parent=39 // pred_check_branch
        %1309 = sbr.rel (%p1307) target = $region48
      $region47: #{_lambda_.2} parent=39 // pred_region
        %p1310 = scmp.lt.s32.totalorder %s16, 1
        %s1311 = scalar_select %p1310, %s16, 1
        %s1312 = smul.addr %s1311, 2
        %s1313 = scalar_lea.vmem %s3, %s1312
      $region48: #{_lambda_.2} parent=39 // pred_fallthru
        _
    $region40: #{_lambda_.2} parent=5 // pred_fallthru
      _
  $region6: #{_lambda_.2} parent=0 // loop_footer
    %s14 = sadd.s32 1, %s10
  $region7: #{_lambda_.2} parent=0 // loop_footer_branch
    %9 = sbr.rel target = $region3
  $region8: #{_lambda_.2} parent=0 // loop_exit
    _

</llo_original>
